<compile_context>
chip_gen: v7x
topology: tpu7x:2x2x1
jax: 0.10.0
libtpu: 0.0.40
codegen_flags: <defaults>
</compile_context>

<pallas_src>
import numpy as np
import jax
import jax.numpy as jnp
from jax.experimental import pallas as pl
from jax.experimental.pallas import tpu as pltpu

EPS = 1e-5
_VMEM_LIMIT = 48 * 1024 * 1024   # explicit scoped-VMEM budget (fits v7x's 64 MiB/TC)


def _round_up(n, m):
    return ((n + m - 1) // m) * m


def _cparams():
    return pltpu.CompilerParams(dimension_semantics=("parallel",),
                                vmem_limit_bytes=_VMEM_LIMIT)


# ------------------------------ kernels ---------------------------------------------
def _make_layer_kernel(tm, n_edges, bn_in):
    """Linear layer l (optionally preceded by folded-BN + ReLU of its input).

    Writes the bf16 pre-activations u = W_l @ h (feature-major, lane-dense) and this
    tile's masked (sum, sum-of-squares) so BN stats for layer l are computed without
    ever re-running earlier layers.  The Linear bias is omitted: it cancels exactly in
    training-mode BatchNorm (mean shifts by b, variance unchanged).
    """
    def _body(x_ref, w_ref, sst_ref, u_ref, ps_ref):
        t = pl.program_id(0)
        if sst_ref is None:                              # layer 1: raw X, already bf16
            hmx = x_ref[...]
        else:                                            # layers 2/3: folded BN + ReLU
            h = x_ref[...].astype(jnp.float32)
            h = jnp.maximum(h * sst_ref[:, 0:1] + sst_ref[:, 1:2], 0.0)
            hmx = h.astype(w_ref.dtype)
        u = jnp.dot(w_ref[...], hmx, preferred_element_type=jnp.float32)   # (H, TM) f32
        u_ref[...] = u.astype(u_ref.dtype)

        # masked per-tile partial sums for this layer's BN statistics (padded edge
        # columns excluded); cross-tile combine happens in a tiny host-side op.
        lane = jax.lax.broadcasted_iota(jnp.int32, (1, tm), 1)
        um = jnp.where(t * tm + lane < n_edges, u, 0.0)
        ps_ref[0] = jnp.concatenate(
            [jnp.sum(um, axis=1, keepdims=True),
             jnp.sum(um * um, axis=1, keepdims=True)], axis=1)

    if bn_in:
        def kernel(x_ref, w_ref, sst_ref, u_ref, ps_ref):
            _body(x_ref, w_ref, sst_ref, u_ref, ps_ref)
    else:
        def kernel(x_ref, w_ref, u_ref, ps_ref):
            _body(x_ref, w_ref, None, u_ref, ps_ref)
    return kernel


def _out_kernel(u_ref, sst_ref, w4b_ref, o_ref):
    """Folded BN3 + ReLU, then the (32 -> 1) head on the VPU (no 1-row MXU pass)."""
    h = jnp.maximum(u_ref[...].astype(jnp.float32) * sst_ref[:, 0:1] + sst_ref[:, 1:2],
                    0.0)                                              # (H, TM)
    z = jnp.sum(h * w4b_ref[:, 0:1], axis=0, keepdims=True) + w4b_ref[0:1, 1:2]
    o_ref[...] = jax.nn.sigmoid(z)                                    # lane-dense (1, TM)


# ------------------------------ per-layer pallas_call --------------------------------
def _layer_call(x_t, w_t, sst, *, tm, num_tiles, n_edges, act_dtype):
    k_dim, e_pad = x_t.shape
    hidden = w_t.shape[0]
    bn_in = sst is not None

    in_specs = [pl.BlockSpec((k_dim, tm), lambda t: (0, t)),
                pl.BlockSpec((hidden, k_dim), lambda t: (0, 0))]       # weight resident
    args = [x_t, w_t]
    if bn_in:
        in_specs.append(pl.BlockSpec((hidden, 2), lambda t: (0, 0)))   # scale/shift
        args.append(sst)

    u, psum = pl.pallas_call(
        _make_layer_kernel(tm, n_edges, bn_in),
        out_shape=(jax.ShapeDtypeStruct((hidden, e_pad), act_dtype),
                   jax.ShapeDtypeStruct((num_tiles, hidden, 2), jnp.float32)),
        grid=(num_tiles,),
        in_specs=in_specs,
        out_specs=(pl.BlockSpec((hidden, tm), lambda t: (0, t)),
                   pl.BlockSpec((1, hidden, 2), lambda t: (t, 0, 0))),
        compiler_params=_cparams(),
    )(*args)
    return u, psum


def _fold_bn(psum, gamma, beta, n_edges):
    """Combine per-tile partial sums and fold BN into (scale, shift).  (H,) math only."""
    s = jnp.sum(psum, axis=0)                            # (H, 2)
    mean = s[:, 0] / n_edges
    var = jnp.maximum(s[:, 1] / n_edges - mean * mean, 0.0)   # biased var (PyTorch BN fwd)
    # TODO(synk): switch to a Welford-style per-tile combine if E[u^2]-mean^2 ever
    #             cancels badly (activations far from zero mean at huge E).
    scale = jnp.asarray(gamma, jnp.float32) * jax.lax.rsqrt(var + EPS)
    shift = jnp.asarray(beta, jnp.float32) - mean * scale
    return jnp.stack([scale, shift], axis=1)             # (H, 2) f32


# ------------------------------ host-side wrapper -------------------------------------
def edge_classifier_forward(embeddings, edge_index, edge_features, params, *,
                            block_edges=16384, matmul_dtype=jnp.bfloat16,
                            act_dtype=jnp.bfloat16):
    """Forward of EdgeClassifier_v1 (training-mode BN semantics). Returns (E, 1) probs."""
    w1, b1, g1, be1, w2, b2, g2, be2, w3, b3, g3, be3, w4, b4 = params
    del b1, b2, b3   # Linear bias feeding a training-mode BatchNorm cancels exactly.
    hidden = w1.shape[1]
    n_edges = edge_index.shape[1]

    tm = min(_round_up(block_edges, 128), _round_up(n_edges, 128))
    num_tiles = pl.cdiv(n_edges, tm)
    e_pad = num_tiles * tm
    pad = e_pad - n_edges

    # glue: build feature-major bf16 X^T (d_in, E_pad) in one fused XLA gather/concat
    # from the transposed embedding table; padded edge columns point at node 0 and are
    # masked inside the kernels, so no extra pad/transpose pass over X is needed.
    # TODO(synk): fuse this gather into the first-layer kernel (VMEM-resident embedding
    #             table + scalar-prefetched edge_index) to remove the last X write.
    emb_t = embeddings.T.astype(matmul_dtype)                          # (emb_dim, N)
    ei = jnp.pad(edge_index, ((0, 0), (0, pad)))
    ef_t = jnp.pad(edge_features.T.astype(matmul_dtype), ((0, 0), (0, pad)))
    x_t = jnp.concatenate([jnp.take(emb_t, ei[0], axis=1),
                           jnp.take(emb_t, ei[1], axis=1),
                           ef_t], axis=0)                              # (d_in, E_pad)

    w1t = w1.T.astype(matmul_dtype)                                    # (H, d_in)
    w2t = w2.T.astype(matmul_dtype)                                    # (H, H)
    w3t = w3.T.astype(matmul_dtype)                                    # (H, H)
    w4b = jnp.concatenate(                                             # (H, 2): [w4 | b4]
        [w4.astype(jnp.float32),
         jnp.broadcast_to(b4.astype(jnp.float32).reshape(1, 1), (hidden, 1))], axis=1)

    common = dict(tm=tm, num_tiles=num_tiles, n_edges=n_edges, act_dtype=act_dtype)

    # Each layer evaluated exactly once; BN stats come from per-tile partial sums.
    u1, ps1 = _layer_call(x_t, w1t, None, **common)
    sst1 = _fold_bn(ps1, g1, be1, n_edges)
    u2, ps2 = _layer_call(u1, w2t, sst1, **common)
    sst2 = _fold_bn(ps2, g2, be2, n_edges)
    u3, ps3 = _layer_call(u2, w3t, sst2, **common)
    sst3 = _fold_bn(ps3, g3, be3, n_edges)

    out = pl.pallas_call(
        _out_kernel,
        out_shape=jax.ShapeDtypeStruct((1, e_pad), jnp.float32),
        grid=(num_tiles,),
        in_specs=[pl.BlockSpec((hidden, tm), lambda t: (0, t)),
                  pl.BlockSpec((hidden, 2), lambda t: (0, 0)),
                  pl.BlockSpec((hidden, 2), lambda t: (0, 0))],
        out_specs=pl.BlockSpec((1, tm), lambda t: (0, t)),
        compiler_params=_cparams(),
    )(u3, sst3, w4b)

    return out[0, :n_edges].reshape(n_edges, 1)


# ------------------------------ synthetic params & reference --------------------------
def make_params(key, input_dim, hidden_dim=32, prior_proba=1.0 - 0.05):
    """Mirrors the module __init__: biases 0, BN weight 1, last Linear bias = prior logit."""
    ks = jax.random.split(key, 4)

    def lin_w(k, d_in, d_out):
        bound = 1.0 / np.sqrt(d_in)
        return jax.random.uniform(k, (d_in, d_out), jnp.float32, -bound, bound)

    zeros_h = jnp.zeros((hidden_dim,), jnp.float32)
    ones_h = jnp.ones((hidden_dim,), jnp.float32)
    b4 = jnp.full((1,), -np.log((1.0 - prior_proba) / prior_proba), jnp.float32)

    return (lin_w(ks[0], input_dim, hidden_dim), zeros_h, ones_h, zeros_h,
            lin_w(ks[1], hidden_dim, hidden_dim), zeros_h, ones_h, zeros_h,
            lin_w(ks[2], hidden_dim, hidden_dim), zeros_h, ones_h, zeros_h,
            lin_w(ks[3], hidden_dim, 1), b4)


def reference_forward(embeddings, edge_index, edge_features, params,
                      matmul_dtype=jnp.bfloat16, act_dtype=jnp.bfloat16):
    """Pure-JAX reference with the same bf16 matmul-input / activation-cache quantization."""
    w1, b1, g1, be1, w2, b2, g2, be2, w3, b3, g3, be3, w4, b4 = params
    x = jnp.concatenate(
        [embeddings[edge_index[0]], embeddings[edge_index[1]], edge_features],
        axis=1).astype(jnp.float32)

    def lin(h, w, b):
        return jnp.dot(h.astype(matmul_dtype), w.astype(matmul_dtype),
                       preferred_element_type=jnp.float32) + b

    def bn_relu(z, g, be):
        m = jnp.mean(z, axis=0, keepdims=True)
        v = jnp.mean((z - m) ** 2, axis=0, keepdims=True)
        zq = z.astype(act_dtype).astype(jnp.float32)      # mirror the bf16 HBM cache
        return jnp.maximum((zq - m) * jax.lax.rsqrt(v + EPS) * g + be, 0.0)

    h = bn_relu(lin(x, w1, b1), g1, be1)
    h = bn_relu(lin(h, w2, b2), g2, be2)
    h = bn_relu(lin(h, w3, b3), g3, be3)
    z = jnp.sum(h * w4.astype(jnp.float32)[:, 0][None, :],   # f32 head, like the VPU path
                axis=1, keepdims=True) + b4
    return jax.nn.sigmoid(z)


if __name__ == "__main__":
    key = jax.random.PRNGKey(0)
    k_emb, k_ef, k_ei, k_par = jax.random.split(key, 4)

    num_nodes = 64
    emb_dim = 8
    edge_feat_dim = 4
    num_edges = 300                      # not a multiple of the tile -> exercises masking
    hidden_dim = 32
    input_dim = 2 * emb_dim + edge_feat_dim   # 20

    embeddings = jax.random.normal(k_emb, (num_nodes, emb_dim), jnp.float32)
    edge_features = jax.random.normal(k_ef, (num_edges, edge_feat_dim), jnp.float32)
    edge_index = jax.random.randint(k_ei, (2, num_edges), 0, num_nodes, jnp.int32)

    params = make_params(k_par, input_dim, hidden_dim)

    # small tile in the demo so the multi-tile masked-stats path is exercised
    fwd = jax.jit(lambda e, ei, ef, p: edge_classifier_forward(e, ei, ef, p,
                                                               block_edges=128))
    out = jax.block_until_ready(fwd(embeddings, edge_index, edge_features, params))

    ref = reference_forward(embeddings, edge_index, edge_features, params)
    assert out.shape == (num_edges, 1)
    max_diff = float(jnp.max(jnp.abs(out - ref)))
    assert jnp.allclose(out, ref, atol=2e-3, rtol=2e-3), (
        "mismatch vs reference; max abs diff = " + str(max_diff))

    print("KERNEL_OK")
</pallas_src>

<mosaic_0001>
module attributes {stable_mosaic.version = 11 : i64} {
  func.func @kernel(%arg0: i32, %arg1: memref<20x128xbf16, #tpu.memory_space<vmem>>, %arg2: memref<32x20xbf16, #tpu.memory_space<vmem>>, %arg3: memref<32x128xbf16, #tpu.memory_space<vmem>>, %arg4: memref<1x32x2xf32, #tpu.memory_space<vmem>>) attributes {dimension_semantics = [#tpu.dimension_semantics<parallel>], iteration_bounds = array<i64: 3>, scalar_prefetch = 0 : i64, scratch_operands = 0 : i64, tpu.core_type = #tpu.core_type<tc>, window_params = [{transform_indices = @transform_0, window_bounds = array<i64: 20, 128>}, {pipeline_mode = #tpu.pipeline_mode<synchronous>, transform_indices = @transform_1, window_bounds = array<i64: 32, 20>}, {transform_indices = @transform_2, window_bounds = array<i64: 32, 128>}, {transform_indices = @transform_3, window_bounds = array<i64: 1, 32, 2>}]} {
    %c0 = arith.constant 0 : index
    %c0_0 = arith.constant 0 : index
    %0 = vector.load %arg1[%c0, %c0_0] : memref<20x128xbf16, #tpu.memory_space<vmem>>, vector<20x128xbf16>
    %c0_1 = arith.constant 0 : index
    %c0_2 = arith.constant 0 : index
    %1 = vector.load %arg2[%c0_1, %c0_2] : memref<32x20xbf16, #tpu.memory_space<vmem>>, vector<32x20xbf16>
    %cst = arith.constant dense<0.000000e+00> : vector<32x128xf32>
    %2 = tpu.matmul %1, %0, %cst {dimension_numbers = #tpu.dot_dimension_numbers<[1], [0], [0], [1], [0, 0, 1, 1], [], []>} : vector<32x20xbf16>, vector<20x128xbf16>, vector<32x128xf32> -> vector<32x128xf32>
    %3 = arith.truncf %2 : vector<32x128xf32> to vector<32x128xbf16>
    %c0_3 = arith.constant 0 : index
    %c0_4 = arith.constant 0 : index
    %4 = vector.load %arg3[%c0_3, %c0_4] : memref<32x128xbf16, #tpu.memory_space<vmem>>, vector<32x128xbf16>
    tpu.vector_store %arg3[%c0_3, %c0_4], %3 {strides = array<i32>} : memref<32x128xbf16, #tpu.memory_space<vmem>>, vector<32x128xbf16>,
    %5 = tpu.iota {dimensions = array<i32: 1>} : vector<1x128xi32>
    %c128_i32 = arith.constant 128 : i32
    %6 = arith.muli %arg0, %c128_i32 : i32
    %7 = vector.broadcast %6 : i32 to vector<1x128xi32>
    %8 = arith.addi %7, %5 : vector<1x128xi32>
    %c300_i32 = arith.constant 300 : i32
    %9 = vector.broadcast %c300_i32 : i32 to vector<1x128xi32>
    %10 = arith.cmpi slt, %8, %9 : vector<1x128xi32>
    %cst_5 = arith.constant 0.000000e+00 : f32
    %11 = vector.shape_cast %10 : vector<1x128xi1> to vector<1x128xi1>
    %12 = vector.broadcast %11 : vector<1x128xi1> to vector<32x128xi1>
    %13 = vector.broadcast %cst_5 : f32 to vector<32x128xf32>
    %14 = arith.select %12, %2, %13 : vector<32x128xi1>, vector<32x128xf32>
    %cst_6 = arith.constant dense<0.000000e+00> : vector<32xf32>
    %15 = vector.multi_reduction <add>, %14, %cst_6 [1] : vector<32x128xf32> to vector<32xf32>
    %16 = vector.shape_cast %15 : vector<32xf32> to vector<32x1xf32>
    %17 = arith.mulf %14, %14 : vector<32x128xf32>
    %cst_7 = arith.constant dense<0.000000e+00> : vector<32xf32>
    %18 = vector.multi_reduction <add>, %17, %cst_7 [1] : vector<32x128xf32> to vector<32xf32>
    %19 = vector.shape_cast %18 : vector<32xf32> to vector<32x1xf32>
    %20 = tpu.concatenate %16, %19 in 1 : vector<32x1xf32>, vector<32x1xf32> -> vector<32x2xf32>
    %c0_8 = arith.constant 0 : index
    %c0_9 = arith.constant 0 : index
    %c0_10 = arith.constant 0 : index
    %21 = vector.load %arg4[%c0_8, %c0_9, %c0_10] : memref<1x32x2xf32, #tpu.memory_space<vmem>>, vector<1x32x2xf32>
    %22 = vector.shape_cast %21 : vector<1x32x2xf32> to vector<32x2xf32>
    %23 = vector.shape_cast %20 : vector<32x2xf32> to vector<1x32x2xf32>
    tpu.vector_store %arg4[%c0_8, %c0_9, %c0_10], %23 {strides = array<i32>} : memref<1x32x2xf32, #tpu.memory_space<vmem>>, vector<1x32x2xf32>,
    return
  }
  func.func @transform_0(%arg0: i32) -> (i32, i32) {
    %c0_i32 = arith.constant 0 : i32
    %c0_i32_0 = arith.constant 0 : i32
    return %c0_i32, %arg0 : i32, i32
  }
  func.func @transform_1(%arg0: i32) -> (i32, i32) {
    %c0_i32 = arith.constant 0 : i32
    %c0_i32_0 = arith.constant 0 : i32
    %c0_i32_1 = arith.constant 0 : i32
    return %c0_i32, %c0_i32_0 : i32, i32
  }
  func.func @transform_2(%arg0: i32) -> (i32, i32) {
    %c0_i32 = arith.constant 0 : i32
    %c0_i32_0 = arith.constant 0 : i32
    return %c0_i32, %arg0 : i32, i32
  }
  func.func @transform_3(%arg0: i32) -> (i32, i32, i32) {
    %c0_i32 = arith.constant 0 : i32
    %c0_i32_0 = arith.constant 0 : i32
    %c0_i32_1 = arith.constant 0 : i32
    return %arg0, %c0_i32, %c0_i32_0 : i32, i32, i32
  }
}

module attributes {stable_mosaic.version = 11 : i64} {
  func.func @kernel(%arg0: i32, %arg1: memref<32x128xbf16, #tpu.memory_space<vmem>>, %arg2: memref<32x32xbf16, #tpu.memory_space<vmem>>, %arg3: memref<32x2xf32, #tpu.memory_space<vmem>>, %arg4: memref<32x128xbf16, #tpu.memory_space<vmem>>, %arg5: memref<1x32x2xf32, #tpu.memory_space<vmem>>) attributes {dimension_semantics = [#tpu.dimension_semantics<parallel>], iteration_bounds = array<i64: 3>, scalar_prefetch = 0 : i64, scratch_operands = 0 : i64, tpu.core_type = #tpu.core_type<tc>, window_params = [{transform_indices = @transform_0, window_bounds = array<i64: 32, 128>}, {pipeline_mode = #tpu.pipeline_mode<synchronous>, transform_indices = @transform_1, window_bounds = array<i64: 32, 32>}, {pipeline_mode = #tpu.pipeline_mode<synchronous>, transform_indices = @transform_2, window_bounds = array<i64: 32, 2>}, {transform_indices = @transform_3, window_bounds = array<i64: 32, 128>}, {transform_indices = @transform_4, window_bounds = array<i64: 1, 32, 2>}]} {
    %c0 = arith.constant 0 : index
    %c0_0 = arith.constant 0 : index
    %0 = vector.load %arg1[%c0, %c0_0] : memref<32x128xbf16, #tpu.memory_space<vmem>>, vector<32x128xbf16>
    %1 = arith.extf %0 : vector<32x128xbf16> to vector<32x128xf32>
    %c0_1 = arith.constant 0 : index
    %c0_2 = arith.constant 0 : index
    %2 = vector.load %arg3[%c0_1, %c0_2] : memref<32x2xf32, #tpu.memory_space<vmem>>, vector<32x1xf32>
    %3 = vector.broadcast %2 : vector<32x1xf32> to vector<32x128xf32>
    %4 = arith.mulf %1, %3 : vector<32x128xf32>
    %c0_3 = arith.constant 0 : index
    %c1 = arith.constant 1 : index
    %5 = vector.load %arg3[%c0_3, %c1] : memref<32x2xf32, #tpu.memory_space<vmem>>, vector<32x1xf32>
    %6 = vector.broadcast %5 : vector<32x1xf32> to vector<32x128xf32>
    %7 = arith.addf %4, %6 : vector<32x128xf32>
    %cst = arith.constant 0.000000e+00 : f32
    %8 = vector.broadcast %cst : f32 to vector<32x128xf32>
    %9 = arith.maximumf %7, %8 : vector<32x128xf32>
    %10 = arith.truncf %9 : vector<32x128xf32> to vector<32x128xbf16>
    %c0_4 = arith.constant 0 : index
    %c0_5 = arith.constant 0 : index
    %11 = vector.load %arg2[%c0_4, %c0_5] : memref<32x32xbf16, #tpu.memory_space<vmem>>, vector<32x32xbf16>
    %cst_6 = arith.constant dense<0.000000e+00> : vector<32x128xf32>
    %12 = tpu.matmul %11, %10, %cst_6 {dimension_numbers = #tpu.dot_dimension_numbers<[1], [0], [0], [1], [0, 0, 1, 1], [], []>} : vector<32x32xbf16>, vector<32x128xbf16>, vector<32x128xf32> -> vector<32x128xf32>
    %13 = arith.truncf %12 : vector<32x128xf32> to vector<32x128xbf16>
    %c0_7 = arith.constant 0 : index
    %c0_8 = arith.constant 0 : index
    %14 = vector.load %arg4[%c0_7, %c0_8] : memref<32x128xbf16, #tpu.memory_space<vmem>>, vector<32x128xbf16>
    tpu.vector_store %arg4[%c0_7, %c0_8], %13 {strides = array<i32>} : memref<32x128xbf16, #tpu.memory_space<vmem>>, vector<32x128xbf16>,
    %15 = tpu.iota {dimensions = array<i32: 1>} : vector<1x128xi32>
    %c128_i32 = arith.constant 128 : i32
    %16 = arith.muli %arg0, %c128_i32 : i32
    %17 = vector.broadcast %16 : i32 to vector<1x128xi32>
    %18 = arith.addi %17, %15 : vector<1x128xi32>
    %c300_i32 = arith.constant 300 : i32
    %19 = vector.broadcast %c300_i32 : i32 to vector<1x128xi32>
    %20 = arith.cmpi slt, %18, %19 : vector<1x128xi32>
    %cst_9 = arith.constant 0.000000e+00 : f32
    %21 = vector.shape_cast %20 : vector<1x128xi1> to vector<1x128xi1>
    %22 = vector.broadcast %21 : vector<1x128xi1> to vector<32x128xi1>
    %23 = vector.broadcast %cst_9 : f32 to vector<32x128xf32>
    %24 = arith.select %22, %12, %23 : vector<32x128xi1>, vector<32x128xf32>
    %cst_10 = arith.constant dense<0.000000e+00> : vector<32xf32>
    %25 = vector.multi_reduction <add>, %24, %cst_10 [1] : vector<32x128xf32> to vector<32xf32>
    %26 = vector.shape_cast %25 : vector<32xf32> to vector<32x1xf32>
    %27 = arith.mulf %24, %24 : vector<32x128xf32>
    %cst_11 = arith.constant dense<0.000000e+00> : vector<32xf32>
    %28 = vector.multi_reduction <add>, %27, %cst_11 [1] : vector<32x128xf32> to vector<32xf32>
    %29 = vector.shape_cast %28 : vector<32xf32> to vector<32x1xf32>
    %30 = tpu.concatenate %26, %29 in 1 : vector<32x1xf32>, vector<32x1xf32> -> vector<32x2xf32>
    %c0_12 = arith.constant 0 : index
    %c0_13 = arith.constant 0 : index
    %c0_14 = arith.constant 0 : index
    %31 = vector.load %arg5[%c0_12, %c0_13, %c0_14] : memref<1x32x2xf32, #tpu.memory_space<vmem>>, vector<1x32x2xf32>
    %32 = vector.shape_cast %31 : vector<1x32x2xf32> to vector<32x2xf32>
    %33 = vector.shape_cast %30 : vector<32x2xf32> to vector<1x32x2xf32>
    tpu.vector_store %arg5[%c0_12, %c0_13, %c0_14], %33 {strides = array<i32>} : memref<1x32x2xf32, #tpu.memory_space<vmem>>, vector<1x32x2xf32>,
    return
  }
  func.func @transform_0(%arg0: i32) -> (i32, i32) {
    %c0_i32 = arith.constant 0 : i32
    %c0_i32_0 = arith.constant 0 : i32
    return %c0_i32, %arg0 : i32, i32
  }
  func.func @transform_1(%arg0: i32) -> (i32, i32) {
    %c0_i32 = arith.constant 0 : i32
    %c0_i32_0 = arith.constant 0 : i32
    %c0_i32_1 = arith.constant 0 : i32
    return %c0_i32, %c0_i32_0 : i32, i32
  }
  func.func @transform_2(%arg0: i32) -> (i32, i32) {
    %c0_i32 = arith.constant 0 : i32
    %c0_i32_0 = arith.constant 0 : i32
    %c0_i32_1 = arith.constant 0 : i32
    return %c0_i32, %c0_i32_0 : i32, i32
  }
  func.func @transform_3(%arg0: i32) -> (i32, i32) {
    %c0_i32 = arith.constant 0 : i32
    %c0_i32_0 = arith.constant 0 : i32
    return %c0_i32, %arg0 : i32, i32
  }
  func.func @transform_4(%arg0: i32) -> (i32, i32, i32) {
    %c0_i32 = arith.constant 0 : i32
    %c0_i32_0 = arith.constant 0 : i32
    %c0_i32_1 = arith.constant 0 : i32
    return %arg0, %c0_i32, %c0_i32_0 : i32, i32, i32
  }
}

module attributes {stable_mosaic.version = 11 : i64} {
  func.func @_out_kernel(%arg0: i32, %arg1: memref<32x128xbf16, #tpu.memory_space<vmem>>, %arg2: memref<32x2xf32, #tpu.memory_space<vmem>>, %arg3: memref<32x2xf32, #tpu.memory_space<vmem>>, %arg4: memref<1x128xf32, #tpu.memory_space<vmem>>) attributes {dimension_semantics = [#tpu.dimension_semantics<parallel>], iteration_bounds = array<i64: 3>, scalar_prefetch = 0 : i64, scratch_operands = 0 : i64, tpu.core_type = #tpu.core_type<tc>, window_params = [{transform_indices = @transform_0, window_bounds = array<i64: 32, 128>}, {pipeline_mode = #tpu.pipeline_mode<synchronous>, transform_indices = @transform_1, window_bounds = array<i64: 32, 2>}, {pipeline_mode = #tpu.pipeline_mode<synchronous>, transform_indices = @transform_2, window_bounds = array<i64: 32, 2>}, {transform_indices = @transform_3, window_bounds = array<i64: 1, 128>}]} {
    %c0 = arith.constant 0 : index
    %c0_0 = arith.constant 0 : index
    %0 = vector.load %arg1[%c0, %c0_0] : memref<32x128xbf16, #tpu.memory_space<vmem>>, vector<32x128xbf16>
    %1 = arith.extf %0 : vector<32x128xbf16> to vector<32x128xf32>
    %c0_1 = arith.constant 0 : index
    %c0_2 = arith.constant 0 : index
    %2 = vector.load %arg2[%c0_1, %c0_2] : memref<32x2xf32, #tpu.memory_space<vmem>>, vector<32x1xf32>
    %3 = vector.broadcast %2 : vector<32x1xf32> to vector<32x128xf32>
    %4 = arith.mulf %1, %3 : vector<32x128xf32>
    %c0_3 = arith.constant 0 : index
    %c1 = arith.constant 1 : index
    %5 = vector.load %arg2[%c0_3, %c1] : memref<32x2xf32, #tpu.memory_space<vmem>>, vector<32x1xf32>
    %6 = vector.broadcast %5 : vector<32x1xf32> to vector<32x128xf32>
    %7 = arith.addf %4, %6 : vector<32x128xf32>
    %cst = arith.constant 0.000000e+00 : f32
    %8 = vector.broadcast %cst : f32 to vector<32x128xf32>
    %9 = arith.maximumf %7, %8 : vector<32x128xf32>
    %c0_4 = arith.constant 0 : index
    %c0_5 = arith.constant 0 : index
    %10 = vector.load %arg3[%c0_4, %c0_5] : memref<32x2xf32, #tpu.memory_space<vmem>>, vector<32x1xf32>
    %11 = vector.broadcast %10 : vector<32x1xf32> to vector<32x128xf32>
    %12 = arith.mulf %9, %11 : vector<32x128xf32>
    %cst_6 = arith.constant dense<0.000000e+00> : vector<128xf32>
    %13 = vector.multi_reduction <add>, %12, %cst_6 [0] : vector<32x128xf32> to vector<128xf32>
    %14 = vector.shape_cast %13 : vector<128xf32> to vector<1x128xf32>
    %c0_7 = arith.constant 0 : index
    %c1_8 = arith.constant 1 : index
    %15 = vector.load %arg3[%c0_7, %c1_8] : memref<32x2xf32, #tpu.memory_space<vmem>>, vector<1x1xf32>
    %16 = vector.broadcast %15 : vector<1x1xf32> to vector<1x128xf32>
    %17 = arith.addf %14, %16 : vector<1x128xf32>
    %18 = arith.negf %17 : vector<1x128xf32>
    %19 = math.exp %18 : vector<1x128xf32>
    %cst_9 = arith.constant 1.000000e+00 : f32
    %20 = vector.broadcast %cst_9 : f32 to vector<1x128xf32>
    %21 = arith.addf %20, %19 : vector<1x128xf32>
    %22 = arith.divf %20, %21 : vector<1x128xf32>
    %c0_10 = arith.constant 0 : index
    %c0_11 = arith.constant 0 : index
    %23 = vector.load %arg4[%c0_10, %c0_11] : memref<1x128xf32, #tpu.memory_space<vmem>>, vector<1x128xf32>
    tpu.vector_store %arg4[%c0_10, %c0_11], %22 {strides = array<i32>} : memref<1x128xf32, #tpu.memory_space<vmem>>, vector<1x128xf32>,
    return
  }
  func.func @transform_0(%arg0: i32) -> (i32, i32) {
    %c0_i32 = arith.constant 0 : i32
    %c0_i32_0 = arith.constant 0 : i32
    return %c0_i32, %arg0 : i32, i32
  }
  func.func @transform_1(%arg0: i32) -> (i32, i32) {
    %c0_i32 = arith.constant 0 : i32
    %c0_i32_0 = arith.constant 0 : i32
    %c0_i32_1 = arith.constant 0 : i32
    return %c0_i32, %c0_i32_0 : i32, i32
  }
  func.func @transform_2(%arg0: i32) -> (i32, i32) {
    %c0_i32 = arith.constant 0 : i32
    %c0_i32_0 = arith.constant 0 : i32
    %c0_i32_1 = arith.constant 0 : i32
    return %c0_i32, %c0_i32_0 : i32, i32
  }
  func.func @transform_3(%arg0: i32) -> (i32, i32) {
    %c0_i32 = arith.constant 0 : i32
    %c0_i32_0 = arith.constant 0 : i32
    return %c0_i32, %arg0 : i32, i32
  }
}

</mosaic_0001>

<llo_original>
// kernel: _lambda_.5
$region0: #{_lambda_.5}
  #allocation0 [shape = 'u32[]', space=smem, size = 0x4, offset = 0x4, fixed_abs, tag = 'smem constant byte address 0x4 - core index']
  #allocation1 [shape = 'u32[144,128]{1,0:T(1,128)}', space=vmem, size = 0x12000, scoped, tag = 'internal scratch']
  %s0 = inlined_call_operand.vmem [shape: bf16[32,384], index: 0, kind: input, shape index: {}]
  %s1 = inlined_call_operand.vmem [shape: bf16[32,32], index: 1, kind: input, shape index: {}]
  %s2 = inlined_call_operand.vmem [shape: f32[32,2], index: 2, kind: input, shape index: {}]
  %s3 = inlined_call_operand.vmem [shape: bf16[32,384], index: 3, kind: output, shape index: {0}]
  %s4 = inlined_call_operand.vmem [shape: f32[3,32,2], index: 4, kind: output, shape index: {1}]
  %5 = xla_tuple %s3, %s4
  %s6 = sld [smem:[#allocation0]]
  $region131: #{_lambda_.5} parent=0
    _
  %s8 = ssub.s32 1, %s6
  %s9 = scalar_select 0, %s8, %s6
  $region1: #{_lambda_.5} parent=0
    #allocation2 [shape = 'u8[16384]{0}', space=vmem, size = 0x4000, scoped, tag = 'input window, operand 0']
    #allocation3 [shape = 'u8[16384]{0}', space=vmem, size = 0x4000, scoped, tag = 'output window, operand 0']
    loop: start=0, step=1, limit=5
    $region2: #{_lambda_.5} parent=1 // loop_pre_header
      _
    $region3: #{_lambda_.5} parent=1 // loop_header
      %s11 = sphi 0, %s15
      %p12 = scmp.ge.s32.totalorder %s11, 5
      %s21 = sphi 0, %s23
      %s24 = sphi 0, %s21
      %s25 = sphi 0, %s24
      %s41 = sphi 0, %s25
      %s45 = sphi 0, %s45
      %s47 = sphi 0, %s45
      %s48 = sphi 0, %s47
      %s62 = sphi 0, %s48
      %s66 = sphi 0, %s66
      %s68 = sphi 0, %s66
      %s69 = sphi 0, %s68
      %s83 = sphi 0, %s69
      %s89 = sphi 0, %s91
      %s92 = sphi 0, %s89
      %s93 = sphi 0, %s92
      %s109 = sphi 0, %s93
      %s115 = sphi 0, %s117
      %s118 = sphi 0, %s115
      %s119 = sphi 0, %s118
      %s135 = sphi 0, %s119
    $region4: #{_lambda_.5} parent=1 // loop_header_branch
      %14 = sbr.rel (%p12) target = $region8
    $region5: #{_lambda_.5} parent=1 // loop_body
      %s16 = ssub.s32 %s11, 1
      %s17 = ssub.s32 %s11, 2
      %s18 = sadd.s32 %s11, 1
      %s19 = ssub.s32 %s11, %s18
      %p20 = scmp.eq.s32.totalorder %s19, 0
      %s22 = sadd.s32 %s21, 1
      %s23 = scalar_select %p20, %s21, %s22
      %p26 = pneg %p20
      %p27 = scmp.eq.s32.totalorder %s11, 2
      %p28 = por %p26, %p27
      %p29 = scmp.ne.s32.totalorder %s21, %s24
      %p30 = scmp.eq.s32.totalorder %s11, 0
      %p31 = por %p29, %p30
      %p32 = scmp.ne.s32.totalorder %s21, %s24
      %p33 = scmp.eq.s32.totalorder %s16, 2
      %p34 = por %p32, %p33
      %p35 = scmp.ne.s32.totalorder %s24, %s25
      %p36 = scmp.eq.s32.totalorder %s16, 0
      %p37 = por %p35, %p36
      %p38 = scmp.ne.s32.totalorder %s24, %s25
      %p39 = scmp.eq.s32.totalorder %s17, 2
      %p40 = por %p38, %p39
      %p42 = scmp.ne.s32.totalorder %s25, %s41
      %p43 = scmp.eq.s32.totalorder %s17, 0
      %p44 = por %p42, %p43
      %s46 = sadd.s32 %s45, 1
      %p49 = scmp.eq.s32.totalorder %s11, 2
      %p50 = scmp.ne.s32.totalorder %s45, %s47
      %p51 = scmp.eq.s32.totalorder %s11, 0
      %p52 = por %p50, %p51
      %p53 = scmp.ne.s32.totalorder %s45, %s47
      %p54 = scmp.eq.s32.totalorder %s16, 2
      %p55 = por %p53, %p54
      %p56 = scmp.ne.s32.totalorder %s47, %s48
      %p57 = scmp.eq.s32.totalorder %s16, 0
      %p58 = por %p56, %p57
      %p59 = scmp.ne.s32.totalorder %s47, %s48
      %p60 = scmp.eq.s32.totalorder %s17, 2
      %p61 = por %p59, %p60
      %p63 = scmp.ne.s32.totalorder %s48, %s62
      %p64 = scmp.eq.s32.totalorder %s17, 0
      %p65 = por %p63, %p64
      %s67 = sadd.s32 %s66, 1
      %p70 = scmp.eq.s32.totalorder %s11, 2
      %p71 = scmp.ne.s32.totalorder %s66, %s68
      %p72 = scmp.eq.s32.totalorder %s11, 0
      %p73 = por %p71, %p72
      %p74 = scmp.ne.s32.totalorder %s66, %s68
      %p75 = scmp.eq.s32.totalorder %s16, 2
      %p76 = por %p74, %p75
      %p77 = scmp.ne.s32.totalorder %s68, %s69
      %p78 = scmp.eq.s32.totalorder %s16, 0
      %p79 = por %p77, %p78
      %p80 = scmp.ne.s32.totalorder %s68, %s69
      %p81 = scmp.eq.s32.totalorder %s17, 2
      %p82 = por %p80, %p81
      %p84 = scmp.ne.s32.totalorder %s69, %s83
      %p85 = scmp.eq.s32.totalorder %s17, 0
      %p86 = por %p84, %p85
      %s87 = ssub.s32 %s11, %s18
      %p88 = scmp.eq.s32.totalorder %s87, 0
      %s90 = sadd.s32 %s89, 1
      %s91 = scalar_select %p88, %s89, %s90
      %p94 = pneg %p88
      %p95 = scmp.eq.s32.totalorder %s11, 2
      %p96 = por %p94, %p95
      %p97 = scmp.ne.s32.totalorder %s89, %s92
      %p98 = scmp.eq.s32.totalorder %s11, 0
      %p99 = por %p97, %p98
      %p100 = scmp.ne.s32.totalorder %s89, %s92
      %p101 = scmp.eq.s32.totalorder %s16, 2
      %p102 = por %p100, %p101
      %p103 = scmp.ne.s32.totalorder %s92, %s93
      %p104 = scmp.eq.s32.totalorder %s16, 0
      %p105 = por %p103, %p104
      %p106 = scmp.ne.s32.totalorder %s92, %s93
      %p107 = scmp.eq.s32.totalorder %s17, 2
      %p108 = por %p106, %p107
      %p110 = scmp.ne.s32.totalorder %s93, %s109
      %p111 = scmp.eq.s32.totalorder %s17, 0
      %p112 = por %p110, %p111
      %s113 = ssub.s32 %s11, %s18
      %p114 = scmp.eq.s32.totalorder %s113, 0
      %s116 = sadd.s32 %s115, 1
      %s117 = scalar_select %p114, %s115, %s116
      %p120 = pneg %p114
      %p121 = scmp.eq.s32.totalorder %s11, 2
      %p122 = por %p120, %p121
      %p123 = scmp.ne.s32.totalorder %s115, %s118
      %p124 = scmp.eq.s32.totalorder %s11, 0
      %p125 = por %p123, %p124
      %p126 = scmp.ne.s32.totalorder %s115, %s118
      %p127 = scmp.eq.s32.totalorder %s16, 2
      %p128 = por %p126, %p127
      %p129 = scmp.ne.s32.totalorder %s118, %s119
      %p130 = scmp.eq.s32.totalorder %s16, 0
      %p131 = por %p129, %p130
      %p132 = scmp.ne.s32.totalorder %s118, %s119
      %p133 = scmp.eq.s32.totalorder %s17, 2
      %p134 = por %p132, %p133
      %p136 = scmp.ne.s32.totalorder %s119, %s135
      %p137 = scmp.eq.s32.totalorder %s17, 0
      %p138 = por %p136, %p137
      %p139 = scmp.le.s32.totalorder 1, %s11
      %p140 = scmp.lt.s32.totalorder %s11, 4
      %p141 = pnand %p139, %p140
      %p142 = pneg %p141
      // Predicated region
      $region9: #{_lambda_.5} parent=5 // pred_check
        _
      $region10: #{_lambda_.5} parent=5 // pred_check_branch
        %144 = sbr.rel (%p141) target = $region12
      $region11: #{_lambda_.5} parent=5 // pred_region
        %s145 = ssub.s32 %s11, 1
        // Predicated region
        $region13: #{_lambda_.5} parent=11 // pred_check
          %p146 = pneg %p58
        $region14: #{_lambda_.5} parent=11 // pred_check_branch
          %148 = sbr.rel (%p146) target = $region16
        $region15: #{_lambda_.5} parent=11 // pred_region
          _
        $region16: #{_lambda_.5} parent=11 // pred_fallthru
          _
        // Predicated region
        $region17: #{_lambda_.5} parent=11 // pred_check
          %p149 = pneg %p79
        $region18: #{_lambda_.5} parent=11 // pred_check_branch
          %151 = sbr.rel (%p149) target = $region20
        $region19: #{_lambda_.5} parent=11 // pred_region
          _
        $region20: #{_lambda_.5} parent=11 // pred_fallthru
          _
      $region12: #{_lambda_.5} parent=5 // pred_fallthru
        _
      %p152 = scmp.lt.s32.totalorder %s11, 3
      // Predicated region
      $region21: #{_lambda_.5} parent=5 // pred_check
        %p153 = pneg %p152
      $region22: #{_lambda_.5} parent=5 // pred_check_branch
        %155 = sbr.rel (%p153) target = $region24
      $region23: #{_lambda_.5} parent=5 // pred_region
        // Predicated region
        $region25: #{_lambda_.5} parent=23 // pred_check
          %p156 = pneg %p31
        $region26: #{_lambda_.5} parent=23 // pred_check_branch
          %158 = sbr.rel (%p156) target = $region28
        $region27: #{_lambda_.5} parent=23 // pred_region
          %s159 = sand.u32 %s21, 1
          %s160 = sand.u32 %s21, 1
          %s161 = smul.addr %s160, 16
          %s162 = scalar_lea.vmem [#allocation2], %s161
          %s163 = smul.addr %s11, 4
          %s164 = scalar_lea.vmem %s0, %s163
          // Predicated region
          $region29: #{_lambda_.5} parent=27 // pred_check
            _
          $region30: #{_lambda_.5} parent=27 // pred_check_branch
            %166 = sbr.rel (0) target = $region32
          $region31: #{_lambda_.5} parent=27 // pred_region
            // Predicated region
            $region33: #{_lambda_.5} parent=31 // pred_check
              _
            $region34: #{_lambda_.5} parent=31 // pred_check_branch
              %168 = sbr.rel target = $region36
            $region35: #{_lambda_.5} parent=31 // pred_region
              // Predicated region
              $region48: #{_lambda_.5} parent=35 // pred_check
                _
              $region49: #{_lambda_.5} parent=35 // pred_check_branch
                %189 = sbr.rel (0) target = $region51
              $region50: #{_lambda_.5} parent=35 // pred_region
                loop: start=0, step=1, limit=1
                $region52: #{_lambda_.5} parent=50 // loop_pre_header
                  _
                $region53: #{_lambda_.5} parent=50 // loop_header
                  %s191 = sphi 0, %s195
                  %p192 = scmp.ge.s32.totalorder %s191, 1
                  %s196 = sphi %s164, %s164
                  %s197 = sphi %s162, %s162
                $region54: #{_lambda_.5} parent=50 // loop_header_branch
                  %194 = sbr.rel (%p192) target = $region58
                $region55: #{_lambda_.5} parent=50 // loop_body
                  _
                $region56: #{_lambda_.5} parent=50 // loop_footer
                  %s195 = sadd.s32 1, %s191
                $region57: #{_lambda_.5} parent=50 // loop_footer_branch
                  %190 = sbr.rel target = $region53
                $region58: #{_lambda_.5} parent=50 // loop_exit
                  _
                loop: start=0, step=1, limit=1
                $region59: #{_lambda_.5} parent=50 // loop_pre_header
                  _
                $region60: #{_lambda_.5} parent=50 // loop_header
                  %s200 = sphi 0, %s204
                  %p201 = scmp.ge.s32.totalorder %s200, 1
                  %s205 = sphi %s164, %s164
                  %s206 = sphi %s162, %s162
                $region61: #{_lambda_.5} parent=50 // loop_header_branch
                  %203 = sbr.rel (%p201) target = $region65
                $region62: #{_lambda_.5} parent=50 // loop_body
                  %v207 = vld [vmem:[%s205] sm:$0xf]
                  %208 = vst [vmem:[%s206] sm:$0xf] %v207
                  %v209 = vld [vmem:[%s205 + $0xc] sm:$0xf]
                  %210 = vst [vmem:[%s206 + $0x4] sm:$0xf] %v209
                  %v211 = vld [vmem:[%s205 + $0x18] sm:$0xf]
                  %212 = vst [vmem:[%s206 + $0x8] sm:$0xf] %v211
                  %v213 = vld [vmem:[%s205 + $0x24] sm:$0xf]
                  %214 = vst [vmem:[%s206 + $0xc] sm:$0xf] %v213
                $region63: #{_lambda_.5} parent=50 // loop_footer
                  %s204 = sadd.s32 1, %s200
                $region64: #{_lambda_.5} parent=50 // loop_footer_branch
                  %199 = sbr.rel target = $region60
                $region65: #{_lambda_.5} parent=50 // loop_exit
                  _
              $region51: #{_lambda_.5} parent=35 // pred_fallthru
                _
            $region36: #{_lambda_.5} parent=31 // pred_fallthru
              _
            // Predicated region
            $region37: #{_lambda_.5} parent=31 // pred_check
              _
            $region38: #{_lambda_.5} parent=31 // pred_check_branch
              %170 = sbr.rel (0) target = $region40
            $region39: #{_lambda_.5} parent=31 // pred_region
              loop: start=0, step=1, limit=1
              $region41: #{_lambda_.5} parent=39 // loop_pre_header
                _
              $region42: #{_lambda_.5} parent=39 // loop_header
                %s173 = sphi 0, %s177
                %p174 = scmp.ge.s32.totalorder %s173, 1
                %s178 = sphi %s164, %s164
                %s179 = sphi %s162, %s162
              $region43: #{_lambda_.5} parent=39 // loop_header_branch
                %176 = sbr.rel (%p174) target = $region47
              $region44: #{_lambda_.5} parent=39 // loop_body
                %v180 = vld [vmem:[%s178] sm:$0xf]
                %181 = vst [vmem:[%s179] sm:$0xf] %v180
                %v182 = vld [vmem:[%s178 + $0xc] sm:$0xf]
                %183 = vst [vmem:[%s179 + $0x4] sm:$0xf] %v182
                %v184 = vld [vmem:[%s178 + $0x18] sm:$0xf]
                %185 = vst [vmem:[%s179 + $0x8] sm:$0xf] %v184
                %v186 = vld [vmem:[%s178 + $0x24] sm:$0xf]
                %187 = vst [vmem:[%s179 + $0xc] sm:$0xf] %v186
              $region45: #{_lambda_.5} parent=39 // loop_footer
                %s177 = sadd.s32 1, %s173
              $region46: #{_lambda_.5} parent=39 // loop_footer_branch
                %172 = sbr.rel target = $region42
              $region47: #{_lambda_.5} parent=39 // loop_exit
                _
            $region40: #{_lambda_.5} parent=31 // pred_fallthru
              _
          $region32: #{_lambda_.5} parent=27 // pred_fallthru
            _
          %215 = vnop
        $region28: #{_lambda_.5} parent=23 // pred_fallthru
          _
      $region24: #{_lambda_.5} parent=5 // pred_fallthru
        _
      %p216 = scmp.le.s32.totalorder 1, %s11
      %p217 = scmp.lt.s32.totalorder %s11, 4
      %p218 = pnand %p216, %p217
      %p219 = pneg %p218
      // Predicated region
      $region66: #{_lambda_.5} parent=5 // pred_check
        _
      $region67: #{_lambda_.5} parent=5 // pred_check_branch
        %221 = sbr.rel (%p218) target = $region69
      $region68: #{_lambda_.5} parent=5 // pred_region
        %s222 = ssub.s32 %s11, 1
        %s223 = sand.u32 %s24, 1
        %s224 = sand.u32 %s24, 1
        %s225 = smul.addr %s224, 16
        %s226 = scalar_lea.vmem [#allocation2], %s225
        // Predicated region
        $region70: #{_lambda_.5} parent=68 // pred_check
          %p227 = pneg %p37
        $region71: #{_lambda_.5} parent=68 // pred_check_branch
          %229 = sbr.rel (%p227) target = $region73
        $region72: #{_lambda_.5} parent=68 // pred_region
          _
        $region73: #{_lambda_.5} parent=68 // pred_fallthru
          _
        %s230 = sand.u32 %s24, 1
        %s231 = sand.u32 %s24, 1
        %s232 = smul.addr %s231, 16
        %s233 = scalar_lea.vmem [#allocation2], %s232
        %p234 = pneg %p37
        %p235 = pneg %p34
        %p236 = pneg %p58
        %p237 = pneg %p55
        %p238 = pneg %p79
        %p239 = pneg %p76
        %p240 = pneg %p105
        %p241 = pneg %p102
        %s242 = sand.u32 %s92, 1
        %s243 = sand.u32 %s92, 1
        %s244 = smul.addr %s243, 16
        %s245 = scalar_lea.vmem [#allocation3], %s244
        %p246 = pneg %p131
        %p247 = pneg %p128
        %p248 = scmp.lt.s32.totalorder %s16, 2
        %s249 = scalar_select %p248, %s16, 2
        %s250 = smul.addr %s249, 4
        %s251 = smul.addr %s250, 8
        %s252 = scalar_lea.vmem %s4, %s251
        %p253 = scmp.lt.s32.totalorder %s16, 2
        %s254 = scalar_select %p253, %s16, 2
        %s255 = smul.addr %s254, 4
        %s256 = smul.addr %s255, 8
        %s257 = scalar_lea.vmem %s4, %s256
        %v259 = vld [vmem:[%s226] sm:$0xf]
        %v260 = vld [vmem:[%s226 + $0x4] sm:$0xf]
        %v261 = vld [vmem:[%s226 + $0x8] sm:$0xf]
        %v262 = vld [vmem:[%s226 + $0xc] sm:$0xf]
        %v263 = vunpack.c.l.bf16 %v259
        %v264 = vunpack.c.l.bf16 %v260
        %v265 = vunpack.c.l.bf16 %v261
        %v266 = vunpack.c.l.bf16 %v262
        %v267 = vld [vmem:[%s2] sm:$0xff]
        %v268 = vld [vmem:[%s2 + $0x8] sm:$0xff]
        %v269 = vld [vmem:[%s2 + $0x10] sm:$0xff]
        %v270 = vld [vmem:[%s2 + $0x18] sm:$0xff]
        %272 = vset.pattern.permute.xlu0 0
        %273 = vperm.xlu0 %272, %v267
        %v274 = vpop.permute.xlu0 %273
        %277 = vset.pattern.permute.xlu0 0
        %278 = vperm.xlu0 %277, %v268
        %v279 = vpop.permute.xlu0 %278
        %282 = vset.pattern.permute.xlu0 0
        %283 = vperm.xlu0 %282, %v269
        %v284 = vpop.permute.xlu0 %283
        %287 = vset.pattern.permute.xlu0 0
        %288 = vperm.xlu0 %287, %v270
        %v289 = vpop.permute.xlu0 %288
        %v291 = vmul.f32 %v263, %v274
        %v292 = vmul.f32 %v264, %v279
        %v293 = vmul.f32 %v265, %v284
        %v294 = vmul.f32 %v266, %v289
        %295 = vset.pattern.permute.xlu0 1
        %296 = vperm.xlu0 %295, %v267
        %v297 = vpop.permute.xlu0 %296
        %299 = vset.pattern.permute.xlu0 1
        %300 = vperm.xlu0 %299, %v268
        %v301 = vpop.permute.xlu0 %300
        %303 = vset.pattern.permute.xlu0 1
        %304 = vperm.xlu0 %303, %v269
        %v305 = vpop.permute.xlu0 %304
        %307 = vset.pattern.permute.xlu0 1
        %308 = vperm.xlu0 %307, %v270
        %v309 = vpop.permute.xlu0 %308
        %v311 = vadd.f32 %v291, %v297
        %v312 = vadd.f32 %v292, %v301
        %v313 = vadd.f32 %v293, %v305
        %v314 = vadd.f32 %v294, %v309
        %v315 = vmax.f32 %v311, 0.0
        %v316 = vmax.f32 %v312, 0.0
        %v317 = vmax.f32 %v313, 0.0
        %v318 = vmax.f32 %v314, 0.0
        %v319 = vpack.c.bf16 %v316, %v315
        %v320 = vpack.c.bf16 %v318, %v317
        %v321 = vld [vmem:[%s1] sm:$0xf]
        %v322 = vld [vmem:[%s1 + $0x4] sm:$0xf]
        %v323 = vld [vmem:[%s1 + $0x8] sm:$0xf]
        %v324 = vld [vmem:[%s1 + $0xc] sm:$0xf]
        %v329 = vunpack.c.l.b16 %v321
        %v330 = vunpack.c.l.b16 %v322
        %v331 = vunpack.c.l.b16 %v323
        %v332 = vunpack.c.l.b16 %v324
        %v333 = vpack.c.b16 %v330, %v329
        %v334 = vpack.c.b16 %v332, %v331
        %vm335 = vcmask 261120
        %v337 = vsel %vm335, %v333, 0
        %v340 = vsel %vm335, %v334, 0
        %342 = vmatprep.subr.bf16.mxu0 0
        %343 = vmatpush1.bf16.msra.mxu0 %v319
        %344 = vmatprep.subr.bf16.mxu0 0
        %345 = vmatpush1.bf16.msra.mxu0 %v320
        %346 = vmatprep.subr.bf16.mxu0 0
        %347 = vmatpush1.bf16.msra.mxu0 0
        %348 = vmatprep.subr.bf16.mxu0 0
        %349 = vmatpush1.bf16.msra.mxu0 0
        %350 = vmatprep.subr.bf16.mxu0 0
        %351 = vmatpush1.bf16.msra.mxu0 0
        %352 = vmatprep.subr.bf16.mxu0 0
        %353 = vmatpush1.bf16.msra.mxu0 0
        %354 = vmatprep.subr.bf16.mxu0 0
        %355 = vmatpush1.bf16.msra.mxu0 0
        %356 = vmatprep.subr.bf16.mxu0 0
        %357 = vmatpush1.bf16.msra.mxu0 0
        %358 = vmatprep.subr.bf16.mxu0 0
        %359 = vmatpush1.bf16.msra.mxu0 0
        %360 = vmatprep.subr.bf16.mxu0 0
        %361 = vmatpush1.bf16.msra.mxu0 0
        %362 = vmatprep.subr.bf16.mxu0 0
        %363 = vmatpush1.bf16.msra.mxu0 0
        %364 = vmatprep.subr.bf16.mxu0 0
        %365 = vmatpush1.bf16.msra.mxu0 0
        %366 = vmatprep.subr.bf16.mxu0 0
        %367 = vmatpush1.bf16.msra.mxu0 0
        %368 = vmatprep.subr.bf16.mxu0 0
        %369 = vmatpush1.bf16.msra.mxu0 0
        %370 = vmatprep.subr.bf16.mxu0 0
        %371 = vmatpush1.bf16.msra.mxu0 0
        %372 = vmatprep.subr.bf16.mxu0 0
        %373 = vmatpush1.bf16.msra.mxu0 0
        %374 = vmatprep.mubr.bf16.mxu0 0
        %375 = vmatmul.mubr.bf16.gmra.mrb[0].mxu0 %v337
        %v376 = vpop.f32.mrb[0].mxu0
        %v377 = vadd.f32 0.0, %v376
        %v378 = vpop.f32.mrb[0].mxu0
        %v379 = vpop.f32.mrb[0].mxu0
        %v380 = vadd.f32 0.0, %v379
        %v381 = vpop.f32.mrb[0].mxu0
        %382 = vmatprep.mubr.bf16.mxu0 0
        %383 = vmatmul.mubr.bf16.gmra.mrb[0].mxu0 %v340
        %v384 = vpop.f32.mrb[0].mxu0
        %v385 = vadd.f32 0.0, %v384
        %v386 = vpop.f32.mrb[0].mxu0
        %v387 = vpop.f32.mrb[0].mxu0
        %v388 = vadd.f32 0.0, %v387
        %v389 = vpop.f32.mrb[0].mxu0
        %390 = vdwg.mxu0
        %v391 = vpack.c.bf16 %v380, %v377
        %v392 = vpack.c.bf16 %v388, %v385
        %v395 = vunpack.c.l.b16 %v391
        %v396 = vunpack.c.h.b16 %v391
        %v397 = vunpack.c.l.b16 %v392
        %v398 = vunpack.c.h.b16 %v392
        %v399 = vpack.c.b16 %v395, %v395
        %v400 = vpack.c.b16 %v396, %v396
        %v401 = vpack.c.b16 %v397, %v397
        %v402 = vpack.c.b16 %v398, %v398
        %407 = vst [vmem:[%s245] sm:$0xf] %v399
        %408 = vst [vmem:[%s245 + $0x4] sm:$0xf] %v400
        %409 = vst [vmem:[%s245 + $0x8] sm:$0xf] %v401
        %410 = vst [vmem:[%s245 + $0xc] sm:$0xf] %v402
        %v411 = vlaneseq
        %v412 = vand.u32 %v411, 127
        %s413 = smul.u32 %s16, 128
        %v414 = vstv %s413
        %v415 = vadd.s32 %v414, %v412
        %vm416 = vcmp.lt.s32.totalorder %v415, 300
        %v417 = vsel %vm416, 1, 0
        %vm418 = vcmp.eq.s32.totalorder %v417, 1
        %v419 = vsel %vm418, %v377, 0.0
        %v420 = vsel %vm418, %v380, 0.0
        %v421 = vsel %vm418, %v385, 0.0
        %v422 = vsel %vm418, %v388, 0.0
        %423 = vadd.xlane.f32.xlu0 %v419
        %v424 = vpop.xlane.xlu0 %423
        %425 = vadd.xlane.f32.xlu0 %v420
        %v426 = vpop.xlane.xlu0 %425
        %427 = vadd.xlane.f32.xlu0 %v421
        %v428 = vpop.xlane.xlu0 %427
        %429 = vadd.xlane.f32.xlu0 %v422
        %v430 = vpop.xlane.xlu0 %429
        %v431 = vmul.f32 %v419, %v419
        %v432 = vmul.f32 %v420, %v420
        %v433 = vmul.f32 %v421, %v421
        %v434 = vmul.f32 %v422, %v422
        %435 = vadd.xlane.f32.xlu0 %v431
        %v436 = vpop.xlane.xlu0 %435
        %437 = vadd.xlane.f32.xlu0 %v432
        %v438 = vpop.xlane.xlu0 %437
        %439 = vadd.xlane.f32.xlu0 %v433
        %v440 = vpop.xlane.xlu0 %439
        %441 = vadd.xlane.f32.xlu0 %v434
        %v442 = vpop.xlane.xlu0 %441
        %vm443 = vcmask 7168
        %v444 = vsel %vm443, %v424, %v436
        %v445 = vsel %vm443, %v426, %v438
        %v446 = vsel %vm443, %v428, %v440
        %v447 = vsel %vm443, %v430, %v442
        %vm448 = vcmask 15360
        %449 = vst.msk [vmem:[%s257] sm:$0xff] %vm448, %v444
        %450 = vst.msk [vmem:[%s257 + $0x8] sm:$0xff] %vm448, %v445
        %451 = vst.msk [vmem:[%s257 + $0x10] sm:$0xff] %vm448, %v446
        %452 = vst.msk [vmem:[%s257 + $0x18] sm:$0xff] %vm448, %v447
        %s453 = sand.u32 %s92, 1
        %s454 = sand.u32 %s92, 1
        %s455 = smul.addr %s454, 16
        %s456 = scalar_lea.vmem [#allocation3], %s455
        %p457 = scmp.lt.s32.totalorder %s16, 2
        %s458 = scalar_select %p457, %s16, 2
        %s459 = smul.addr %s458, 4
        %s460 = smul.addr %s459, 8
        %s461 = scalar_lea.vmem %s4, %s460
        // Predicated region
        $region74: #{_lambda_.5} parent=68 // pred_check
          %p462 = pneg %p102
        $region75: #{_lambda_.5} parent=68 // pred_check_branch
          %464 = sbr.rel (%p462) target = $region77
        $region76: #{_lambda_.5} parent=68 // pred_region
          %s465 = smul.addr %s16, 4
          %s466 = scalar_lea.vmem %s3, %s465
          // Predicated region
          $region78: #{_lambda_.5} parent=76 // pred_check
            _
          $region79: #{_lambda_.5} parent=76 // pred_check_branch
            %468 = sbr.rel (0) target = $region81
          $region80: #{_lambda_.5} parent=76 // pred_region
            // Predicated region
            $region82: #{_lambda_.5} parent=80 // pred_check
              _
            $region83: #{_lambda_.5} parent=80 // pred_check_branch
              %470 = sbr.rel target = $region85
            $region84: #{_lambda_.5} parent=80 // pred_region
              // Predicated region
              $region97: #{_lambda_.5} parent=84 // pred_check
                _
              $region98: #{_lambda_.5} parent=84 // pred_check_branch
                %491 = sbr.rel (0) target = $region100
              $region99: #{_lambda_.5} parent=84 // pred_region
                loop: start=0, step=1, limit=1
                $region101: #{_lambda_.5} parent=99 // loop_pre_header
                  _
                $region102: #{_lambda_.5} parent=99 // loop_header
                  %s493 = sphi 0, %s497
                  %p494 = scmp.ge.s32.totalorder %s493, 1
                  %s498 = sphi %s456, %s456
                  %s499 = sphi %s466, %s466
                $region103: #{_lambda_.5} parent=99 // loop_header_branch
                  %496 = sbr.rel (%p494) target = $region107
                $region104: #{_lambda_.5} parent=99 // loop_body
                  _
                $region105: #{_lambda_.5} parent=99 // loop_footer
                  %s497 = sadd.s32 1, %s493
                $region106: #{_lambda_.5} parent=99 // loop_footer_branch
                  %492 = sbr.rel target = $region102
                $region107: #{_lambda_.5} parent=99 // loop_exit
                  _
                loop: start=0, step=1, limit=1
                $region108: #{_lambda_.5} parent=99 // loop_pre_header
                  _
                $region109: #{_lambda_.5} parent=99 // loop_header
                  %s502 = sphi 0, %s506
                  %p503 = scmp.ge.s32.totalorder %s502, 1
                  %s507 = sphi %s456, %s456
                  %s508 = sphi %s466, %s466
                $region110: #{_lambda_.5} parent=99 // loop_header_branch
                  %505 = sbr.rel (%p503) target = $region114
                $region111: #{_lambda_.5} parent=99 // loop_body
                  %v509 = vld [vmem:[%s507] sm:$0xf]
                  %510 = vst [vmem:[%s508] sm:$0xf] %v509
                  %v511 = vld [vmem:[%s507 + $0x4] sm:$0xf]
                  %512 = vst [vmem:[%s508 + $0xc] sm:$0xf] %v511
                  %v513 = vld [vmem:[%s507 + $0x8] sm:$0xf]
                  %514 = vst [vmem:[%s508 + $0x18] sm:$0xf] %v513
                  %v515 = vld [vmem:[%s507 + $0xc] sm:$0xf]
                  %516 = vst [vmem:[%s508 + $0x24] sm:$0xf] %v515
                $region112: #{_lambda_.5} parent=99 // loop_footer
                  %s506 = sadd.s32 1, %s502
                $region113: #{_lambda_.5} parent=99 // loop_footer_branch
                  %501 = sbr.rel target = $region109
                $region114: #{_lambda_.5} parent=99 // loop_exit
                  _
              $region100: #{_lambda_.5} parent=84 // pred_fallthru
                _
            $region85: #{_lambda_.5} parent=80 // pred_fallthru
              _
            // Predicated region
            $region86: #{_lambda_.5} parent=80 // pred_check
              _
            $region87: #{_lambda_.5} parent=80 // pred_check_branch
              %472 = sbr.rel (0) target = $region89
            $region88: #{_lambda_.5} parent=80 // pred_region
              loop: start=0, step=1, limit=1
              $region90: #{_lambda_.5} parent=88 // loop_pre_header
                _
              $region91: #{_lambda_.5} parent=88 // loop_header
                %s475 = sphi 0, %s479
                %p476 = scmp.ge.s32.totalorder %s475, 1
                %s480 = sphi %s456, %s456
                %s481 = sphi %s466, %s466
              $region92: #{_lambda_.5} parent=88 // loop_header_branch
                %478 = sbr.rel (%p476) target = $region96
              $region93: #{_lambda_.5} parent=88 // loop_body
                %v482 = vld [vmem:[%s480] sm:$0xf]
                %483 = vst [vmem:[%s481] sm:$0xf] %v482
                %v484 = vld [vmem:[%s480 + $0x4] sm:$0xf]
                %485 = vst [vmem:[%s481 + $0xc] sm:$0xf] %v484
                %v486 = vld [vmem:[%s480 + $0x8] sm:$0xf]
                %487 = vst [vmem:[%s481 + $0x18] sm:$0xf] %v486
                %v488 = vld [vmem:[%s480 + $0xc] sm:$0xf]
                %489 = vst [vmem:[%s481 + $0x24] sm:$0xf] %v488
              $region94: #{_lambda_.5} parent=88 // loop_footer
                %s479 = sadd.s32 1, %s475
              $region95: #{_lambda_.5} parent=88 // loop_footer_branch
                %474 = sbr.rel target = $region91
              $region96: #{_lambda_.5} parent=88 // loop_exit
                _
            $region89: #{_lambda_.5} parent=80 // pred_fallthru
              _
          $region81: #{_lambda_.5} parent=76 // pred_fallthru
            _
          %517 = vnop
        $region77: #{_lambda_.5} parent=68 // pred_fallthru
          _
        // Predicated region
        $region115: #{_lambda_.5} parent=68 // pred_check
          %p518 = pneg %p128
        $region116: #{_lambda_.5} parent=68 // pred_check_branch
          %520 = sbr.rel (%p518) target = $region118
        $region117: #{_lambda_.5} parent=68 // pred_region
          _
        $region118: #{_lambda_.5} parent=68 // pred_fallthru
          _
      $region69: #{_lambda_.5} parent=5 // pred_fallthru
        _
      %p521 = scmp.le.s32.totalorder 2, %s11
      // Predicated region
      $region119: #{_lambda_.5} parent=5 // pred_check
        %p522 = pneg %p521
      $region120: #{_lambda_.5} parent=5 // pred_check_branch
        %524 = sbr.rel (%p522) target = $region122
      $region121: #{_lambda_.5} parent=5 // pred_region
        %s525 = ssub.s32 %s11, 2
        // Predicated region
        $region123: #{_lambda_.5} parent=121 // pred_check
          %p526 = pneg %p108
        $region124: #{_lambda_.5} parent=121 // pred_check_branch
          %528 = sbr.rel (%p526) target = $region126
        $region125: #{_lambda_.5} parent=121 // pred_region
          %s529 = sand.u32 %s93, 1
          %s530 = sand.u32 %s93, 1
          %s531 = smul.addr %s530, 16
          %s532 = scalar_lea.vmem [#allocation3], %s531
        $region126: #{_lambda_.5} parent=121 // pred_fallthru
          _
        // Predicated region
        $region127: #{_lambda_.5} parent=121 // pred_check
          %p533 = pneg %p134
        $region128: #{_lambda_.5} parent=121 // pred_check_branch
          %535 = sbr.rel (%p533) target = $region130
        $region129: #{_lambda_.5} parent=121 // pred_region
          %p536 = scmp.lt.s32.totalorder %s17, 2
          %s537 = scalar_select %p536, %s17, 2
          %s538 = smul.addr %s537, 4
          %s539 = smul.addr %s538, 8
          %s540 = scalar_lea.vmem %s4, %s539
        $region130: #{_lambda_.5} parent=121 // pred_fallthru
          _
      $region122: #{_lambda_.5} parent=5 // pred_fallthru
        _
    $region6: #{_lambda_.5} parent=1 // loop_footer
      %s15 = sadd.s32 1, %s11
    $region7: #{_lambda_.5} parent=1 // loop_footer_branch
      %10 = sbr.rel target = $region3
    $region8: #{_lambda_.5} parent=1 // loop_exit
      _

// kernel: _lambda_.4
$region0: #{_lambda_.4}
  #allocation0 [shape = 'u32[]', space=smem, size = 0x4, offset = 0x4, fixed_abs, tag = 'smem constant byte address 0x4 - core index']
  #allocation1 [shape = 'u32[144,128]{1,0:T(1,128)}', space=vmem, size = 0x12000, scoped, tag = 'internal scratch']
  %s0 = inlined_call_operand.vmem [shape: bf16[20,384], index: 0, kind: input, shape index: {}]
  %s1 = inlined_call_operand.vmem [shape: bf16[32,20], index: 1, kind: input, shape index: {}]
  %s2 = inlined_call_operand.vmem [shape: bf16[32,384], index: 2, kind: output, shape index: {0}]
  %s3 = inlined_call_operand.vmem [shape: f32[3,32,2], index: 3, kind: output, shape index: {1}]
  %4 = xla_tuple %s2, %s3
  %s5 = sld [smem:[#allocation0]]
  $region127: #{_lambda_.4} parent=0
    _
  %s7 = ssub.s32 1, %s5
  %s8 = scalar_select 0, %s7, %s5
  $region1: #{_lambda_.4} parent=0
    #allocation2 [shape = 'u8[12288]{0}', space=vmem, size = 0x3000, scoped, tag = 'input window, operand 0']
    #allocation3 [shape = 'u8[16384]{0}', space=vmem, size = 0x4000, scoped, tag = 'output window, operand 0']
    loop: start=0, step=1, limit=5
    $region2: #{_lambda_.4} parent=1 // loop_pre_header
      _
    $region3: #{_lambda_.4} parent=1 // loop_header
      %s10 = sphi 0, %s14
      %p11 = scmp.ge.s32.totalorder %s10, 5
      %s20 = sphi 0, %s22
      %s23 = sphi 0, %s20
      %s24 = sphi 0, %s23
      %s40 = sphi 0, %s24
      %s44 = sphi 0, %s44
      %s46 = sphi 0, %s44
      %s47 = sphi 0, %s46
      %s61 = sphi 0, %s47
      %s67 = sphi 0, %s69
      %s70 = sphi 0, %s67
      %s71 = sphi 0, %s70
      %s87 = sphi 0, %s71
      %s93 = sphi 0, %s95
      %s96 = sphi 0, %s93
      %s97 = sphi 0, %s96
      %s113 = sphi 0, %s97
    $region4: #{_lambda_.4} parent=1 // loop_header_branch
      %13 = sbr.rel (%p11) target = $region8
    $region5: #{_lambda_.4} parent=1 // loop_body
      %s15 = ssub.s32 %s10, 1
      %s16 = ssub.s32 %s10, 2
      %s17 = sadd.s32 %s10, 1
      %s18 = ssub.s32 %s10, %s17
      %p19 = scmp.eq.s32.totalorder %s18, 0
      %s21 = sadd.s32 %s20, 1
      %s22 = scalar_select %p19, %s20, %s21
      %p25 = pneg %p19
      %p26 = scmp.eq.s32.totalorder %s10, 2
      %p27 = por %p25, %p26
      %p28 = scmp.ne.s32.totalorder %s20, %s23
      %p29 = scmp.eq.s32.totalorder %s10, 0
      %p30 = por %p28, %p29
      %p31 = scmp.ne.s32.totalorder %s20, %s23
      %p32 = scmp.eq.s32.totalorder %s15, 2
      %p33 = por %p31, %p32
      %p34 = scmp.ne.s32.totalorder %s23, %s24
      %p35 = scmp.eq.s32.totalorder %s15, 0
      %p36 = por %p34, %p35
      %p37 = scmp.ne.s32.totalorder %s23, %s24
      %p38 = scmp.eq.s32.totalorder %s16, 2
      %p39 = por %p37, %p38
      %p41 = scmp.ne.s32.totalorder %s24, %s40
      %p42 = scmp.eq.s32.totalorder %s16, 0
      %p43 = por %p41, %p42
      %s45 = sadd.s32 %s44, 1
      %p48 = scmp.eq.s32.totalorder %s10, 2
      %p49 = scmp.ne.s32.totalorder %s44, %s46
      %p50 = scmp.eq.s32.totalorder %s10, 0
      %p51 = por %p49, %p50
      %p52 = scmp.ne.s32.totalorder %s44, %s46
      %p53 = scmp.eq.s32.totalorder %s15, 2
      %p54 = por %p52, %p53
      %p55 = scmp.ne.s32.totalorder %s46, %s47
      %p56 = scmp.eq.s32.totalorder %s15, 0
      %p57 = por %p55, %p56
      %p58 = scmp.ne.s32.totalorder %s46, %s47
      %p59 = scmp.eq.s32.totalorder %s16, 2
      %p60 = por %p58, %p59
      %p62 = scmp.ne.s32.totalorder %s47, %s61
      %p63 = scmp.eq.s32.totalorder %s16, 0
      %p64 = por %p62, %p63
      %s65 = ssub.s32 %s10, %s17
      %p66 = scmp.eq.s32.totalorder %s65, 0
      %s68 = sadd.s32 %s67, 1
      %s69 = scalar_select %p66, %s67, %s68
      %p72 = pneg %p66
      %p73 = scmp.eq.s32.totalorder %s10, 2
      %p74 = por %p72, %p73
      %p75 = scmp.ne.s32.totalorder %s67, %s70
      %p76 = scmp.eq.s32.totalorder %s10, 0
      %p77 = por %p75, %p76
      %p78 = scmp.ne.s32.totalorder %s67, %s70
      %p79 = scmp.eq.s32.totalorder %s15, 2
      %p80 = por %p78, %p79
      %p81 = scmp.ne.s32.totalorder %s70, %s71
      %p82 = scmp.eq.s32.totalorder %s15, 0
      %p83 = por %p81, %p82
      %p84 = scmp.ne.s32.totalorder %s70, %s71
      %p85 = scmp.eq.s32.totalorder %s16, 2
      %p86 = por %p84, %p85
      %p88 = scmp.ne.s32.totalorder %s71, %s87
      %p89 = scmp.eq.s32.totalorder %s16, 0
      %p90 = por %p88, %p89
      %s91 = ssub.s32 %s10, %s17
      %p92 = scmp.eq.s32.totalorder %s91, 0
      %s94 = sadd.s32 %s93, 1
      %s95 = scalar_select %p92, %s93, %s94
      %p98 = pneg %p92
      %p99 = scmp.eq.s32.totalorder %s10, 2
      %p100 = por %p98, %p99
      %p101 = scmp.ne.s32.totalorder %s93, %s96
      %p102 = scmp.eq.s32.totalorder %s10, 0
      %p103 = por %p101, %p102
      %p104 = scmp.ne.s32.totalorder %s93, %s96
      %p105 = scmp.eq.s32.totalorder %s15, 2
      %p106 = por %p104, %p105
      %p107 = scmp.ne.s32.totalorder %s96, %s97
      %p108 = scmp.eq.s32.totalorder %s15, 0
      %p109 = por %p107, %p108
      %p110 = scmp.ne.s32.totalorder %s96, %s97
      %p111 = scmp.eq.s32.totalorder %s16, 2
      %p112 = por %p110, %p111
      %p114 = scmp.ne.s32.totalorder %s97, %s113
      %p115 = scmp.eq.s32.totalorder %s16, 0
      %p116 = por %p114, %p115
      %p117 = scmp.le.s32.totalorder 1, %s10
      %p118 = scmp.lt.s32.totalorder %s10, 4
      %p119 = pnand %p117, %p118
      %p120 = pneg %p119
      // Predicated region
      $region9: #{_lambda_.4} parent=5 // pred_check
        _
      $region10: #{_lambda_.4} parent=5 // pred_check_branch
        %122 = sbr.rel (%p119) target = $region12
      $region11: #{_lambda_.4} parent=5 // pred_region
        %s123 = ssub.s32 %s10, 1
        // Predicated region
        $region13: #{_lambda_.4} parent=11 // pred_check
          %p124 = pneg %p57
        $region14: #{_lambda_.4} parent=11 // pred_check_branch
          %126 = sbr.rel (%p124) target = $region16
        $region15: #{_lambda_.4} parent=11 // pred_region
          _
        $region16: #{_lambda_.4} parent=11 // pred_fallthru
          _
      $region12: #{_lambda_.4} parent=5 // pred_fallthru
        _
      %p127 = scmp.lt.s32.totalorder %s10, 3
      // Predicated region
      $region17: #{_lambda_.4} parent=5 // pred_check
        %p128 = pneg %p127
      $region18: #{_lambda_.4} parent=5 // pred_check_branch
        %130 = sbr.rel (%p128) target = $region20
      $region19: #{_lambda_.4} parent=5 // pred_region
        // Predicated region
        $region21: #{_lambda_.4} parent=19 // pred_check
          %p131 = pneg %p30
        $region22: #{_lambda_.4} parent=19 // pred_check_branch
          %133 = sbr.rel (%p131) target = $region24
        $region23: #{_lambda_.4} parent=19 // pred_region
          %s134 = sand.u32 %s20, 1
          %s135 = sand.u32 %s20, 1
          %s136 = smul.addr %s135, 12
          %s137 = scalar_lea.vmem [#allocation2], %s136
          %s138 = smul.addr %s10, 4
          %s139 = scalar_lea.vmem %s0, %s138
          // Predicated region
          $region25: #{_lambda_.4} parent=23 // pred_check
            _
          $region26: #{_lambda_.4} parent=23 // pred_check_branch
            %141 = sbr.rel (0) target = $region28
          $region27: #{_lambda_.4} parent=23 // pred_region
            // Predicated region
            $region29: #{_lambda_.4} parent=27 // pred_check
              _
            $region30: #{_lambda_.4} parent=27 // pred_check_branch
              %143 = sbr.rel target = $region32
            $region31: #{_lambda_.4} parent=27 // pred_region
              // Predicated region
              $region44: #{_lambda_.4} parent=31 // pred_check
                _
              $region45: #{_lambda_.4} parent=31 // pred_check_branch
                %162 = sbr.rel (0) target = $region47
              $region46: #{_lambda_.4} parent=31 // pred_region
                loop: start=0, step=1, limit=1
                $region48: #{_lambda_.4} parent=46 // loop_pre_header
                  _
                $region49: #{_lambda_.4} parent=46 // loop_header
                  %s164 = sphi 0, %s168
                  %p165 = scmp.ge.s32.totalorder %s164, 1
                  %s169 = sphi %s139, %s139
                  %s170 = sphi %s137, %s137
                $region50: #{_lambda_.4} parent=46 // loop_header_branch
                  %167 = sbr.rel (%p165) target = $region54
                $region51: #{_lambda_.4} parent=46 // loop_body
                  _
                $region52: #{_lambda_.4} parent=46 // loop_footer
                  %s168 = sadd.s32 1, %s164
                $region53: #{_lambda_.4} parent=46 // loop_footer_branch
                  %163 = sbr.rel target = $region49
                $region54: #{_lambda_.4} parent=46 // loop_exit
                  _
                loop: start=0, step=1, limit=1
                $region55: #{_lambda_.4} parent=46 // loop_pre_header
                  _
                $region56: #{_lambda_.4} parent=46 // loop_header
                  %s173 = sphi 0, %s177
                  %p174 = scmp.ge.s32.totalorder %s173, 1
                  %s178 = sphi %s139, %s139
                  %s179 = sphi %s137, %s137
                $region57: #{_lambda_.4} parent=46 // loop_header_branch
                  %176 = sbr.rel (%p174) target = $region61
                $region58: #{_lambda_.4} parent=46 // loop_body
                  %v180 = vld [vmem:[%s178] sm:$0xf]
                  %181 = vst [vmem:[%s179] sm:$0xf] %v180
                  %v182 = vld [vmem:[%s178 + $0xc] sm:$0xf]
                  %183 = vst [vmem:[%s179 + $0x4] sm:$0xf] %v182
                  %v184 = vld [vmem:[%s178 + $0x18] sm:$0xf]
                  %185 = vst [vmem:[%s179 + $0x8] sm:$0xf] %v184
                $region59: #{_lambda_.4} parent=46 // loop_footer
                  %s177 = sadd.s32 1, %s173
                $region60: #{_lambda_.4} parent=46 // loop_footer_branch
                  %172 = sbr.rel target = $region56
                $region61: #{_lambda_.4} parent=46 // loop_exit
                  _
              $region47: #{_lambda_.4} parent=31 // pred_fallthru
                _
            $region32: #{_lambda_.4} parent=27 // pred_fallthru
              _
            // Predicated region
            $region33: #{_lambda_.4} parent=27 // pred_check
              _
            $region34: #{_lambda_.4} parent=27 // pred_check_branch
              %145 = sbr.rel (0) target = $region36
            $region35: #{_lambda_.4} parent=27 // pred_region
              loop: start=0, step=1, limit=1
              $region37: #{_lambda_.4} parent=35 // loop_pre_header
                _
              $region38: #{_lambda_.4} parent=35 // loop_header
                %s148 = sphi 0, %s152
                %p149 = scmp.ge.s32.totalorder %s148, 1
                %s153 = sphi %s139, %s139
                %s154 = sphi %s137, %s137
              $region39: #{_lambda_.4} parent=35 // loop_header_branch
                %151 = sbr.rel (%p149) target = $region43
              $region40: #{_lambda_.4} parent=35 // loop_body
                %v155 = vld [vmem:[%s153] sm:$0xf]
                %156 = vst [vmem:[%s154] sm:$0xf] %v155
                %v157 = vld [vmem:[%s153 + $0xc] sm:$0xf]
                %158 = vst [vmem:[%s154 + $0x4] sm:$0xf] %v157
                %v159 = vld [vmem:[%s153 + $0x18] sm:$0xf]
                %160 = vst [vmem:[%s154 + $0x8] sm:$0xf] %v159
              $region41: #{_lambda_.4} parent=35 // loop_footer
                %s152 = sadd.s32 1, %s148
              $region42: #{_lambda_.4} parent=35 // loop_footer_branch
                %147 = sbr.rel target = $region38
              $region43: #{_lambda_.4} parent=35 // loop_exit
                _
            $region36: #{_lambda_.4} parent=27 // pred_fallthru
              _
          $region28: #{_lambda_.4} parent=23 // pred_fallthru
            _
          %186 = vnop
        $region24: #{_lambda_.4} parent=19 // pred_fallthru
          _
      $region20: #{_lambda_.4} parent=5 // pred_fallthru
        _
      %p187 = scmp.le.s32.totalorder 1, %s10
      %p188 = scmp.lt.s32.totalorder %s10, 4
      %p189 = pnand %p187, %p188
      %p190 = pneg %p189
      // Predicated region
      $region62: #{_lambda_.4} parent=5 // pred_check
        _
      $region63: #{_lambda_.4} parent=5 // pred_check_branch
        %192 = sbr.rel (%p189) target = $region65
      $region64: #{_lambda_.4} parent=5 // pred_region
        %s193 = ssub.s32 %s10, 1
        %s194 = sand.u32 %s23, 1
        %s195 = sand.u32 %s23, 1
        %s196 = smul.addr %s195, 12
        %s197 = scalar_lea.vmem [#allocation2], %s196
        // Predicated region
        $region66: #{_lambda_.4} parent=64 // pred_check
          %p198 = pneg %p36
        $region67: #{_lambda_.4} parent=64 // pred_check_branch
          %200 = sbr.rel (%p198) target = $region69
        $region68: #{_lambda_.4} parent=64 // pred_region
          _
        $region69: #{_lambda_.4} parent=64 // pred_fallthru
          _
        %s201 = sand.u32 %s23, 1
        %s202 = sand.u32 %s23, 1
        %s203 = smul.addr %s202, 12
        %s204 = scalar_lea.vmem [#allocation2], %s203
        %p205 = pneg %p36
        %p206 = pneg %p33
        %p207 = pneg %p57
        %p208 = pneg %p54
        %p209 = pneg %p83
        %p210 = pneg %p80
        %s211 = sand.u32 %s70, 1
        %s212 = sand.u32 %s70, 1
        %s213 = smul.addr %s212, 16
        %s214 = scalar_lea.vmem [#allocation3], %s213
        %p215 = pneg %p109
        %p216 = pneg %p106
        %p217 = scmp.lt.s32.totalorder %s15, 2
        %s218 = scalar_select %p217, %s15, 2
        %s219 = smul.addr %s218, 4
        %s220 = smul.addr %s219, 8
        %s221 = scalar_lea.vmem %s3, %s220
        %p222 = scmp.lt.s32.totalorder %s15, 2
        %s223 = scalar_select %p222, %s15, 2
        %s224 = smul.addr %s223, 4
        %s225 = smul.addr %s224, 8
        %s226 = scalar_lea.vmem %s3, %s225
        %v228 = vld [vmem:[%s197] sm:$0xf]
        %v229 = vld [vmem:[%s197 + $0x4] sm:$0xf]
        %v230 = vld [vmem:[%s197 + $0x8] sm:$0x3]
        %v231 = vld [vmem:[%s1] sm:$0xf]
        %v232 = vld [vmem:[%s1 + $0x4] sm:$0xf]
        %v233 = vld [vmem:[%s1 + $0x8] sm:$0xf]
        %v234 = vld [vmem:[%s1 + $0xc] sm:$0xf]
        %v239 = vunpack.c.l.b16 %v231
        %v240 = vunpack.c.l.b16 %v232
        %v241 = vunpack.c.l.b16 %v233
        %v242 = vunpack.c.l.b16 %v234
        %v243 = vpack.c.b16 %v240, %v239
        %v244 = vpack.c.b16 %v242, %v241
        %v248 = vunpack.c.l.b16 %v228
        %v249 = vunpack.c.l.b16 %v229
        %v250 = vunpack.c.l.b16 %v230
        %v251 = vpack.c.b16 %v249, %v248
        %v252 = vpack.c.b16 %v250, %v250
        %vm254 = vcmask 162816
        %v256 = vsel %vm254, %v243, 0
        %v259 = vsel %vm254, %v244, 0
        %vm261 = vcmask 1041408
        %v263 = vsel %vm261, %v252, 0
        %265 = vmatprep.subr.bf16.mxu0 0
        %266 = vmatpush1.bf16.msra.mxu0 %v251
        %267 = vmatprep.subr.bf16.mxu0 0
        %268 = vmatpush1.bf16.msra.mxu0 %v263
        %269 = vmatprep.subr.bf16.mxu0 0
        %270 = vmatpush1.bf16.msra.mxu0 0
        %271 = vmatprep.subr.bf16.mxu0 0
        %272 = vmatpush1.bf16.msra.mxu0 0
        %273 = vmatprep.subr.bf16.mxu0 0
        %274 = vmatpush1.bf16.msra.mxu0 0
        %275 = vmatprep.subr.bf16.mxu0 0
        %276 = vmatpush1.bf16.msra.mxu0 0
        %277 = vmatprep.subr.bf16.mxu0 0
        %278 = vmatpush1.bf16.msra.mxu0 0
        %279 = vmatprep.subr.bf16.mxu0 0
        %280 = vmatpush1.bf16.msra.mxu0 0
        %281 = vmatprep.subr.bf16.mxu0 0
        %282 = vmatpush1.bf16.msra.mxu0 0
        %283 = vmatprep.subr.bf16.mxu0 0
        %284 = vmatpush1.bf16.msra.mxu0 0
        %285 = vmatprep.subr.bf16.mxu0 0
        %286 = vmatpush1.bf16.msra.mxu0 0
        %287 = vmatprep.subr.bf16.mxu0 0
        %288 = vmatpush1.bf16.msra.mxu0 0
        %289 = vmatprep.subr.bf16.mxu0 0
        %290 = vmatpush1.bf16.msra.mxu0 0
        %291 = vmatprep.subr.bf16.mxu0 0
        %292 = vmatpush1.bf16.msra.mxu0 0
        %293 = vmatprep.subr.bf16.mxu0 0
        %294 = vmatpush1.bf16.msra.mxu0 0
        %295 = vmatprep.subr.bf16.mxu0 0
        %296 = vmatpush1.bf16.msra.mxu0 0
        %297 = vmatprep.mubr.bf16.mxu0 0
        %298 = vmatmul.mubr.bf16.gmra.mrb[0].mxu0 %v256
        %v299 = vpop.f32.mrb[0].mxu0
        %v300 = vadd.f32 0.0, %v299
        %v301 = vpop.f32.mrb[0].mxu0
        %v302 = vpop.f32.mrb[0].mxu0
        %v303 = vadd.f32 0.0, %v302
        %v304 = vpop.f32.mrb[0].mxu0
        %305 = vmatprep.mubr.bf16.mxu0 0
        %306 = vmatmul.mubr.bf16.gmra.mrb[0].mxu0 %v259
        %v307 = vpop.f32.mrb[0].mxu0
        %v308 = vadd.f32 0.0, %v307
        %v309 = vpop.f32.mrb[0].mxu0
        %v310 = vpop.f32.mrb[0].mxu0
        %v311 = vadd.f32 0.0, %v310
        %v312 = vpop.f32.mrb[0].mxu0
        %313 = vdwg.mxu0
        %v314 = vpack.c.bf16 %v303, %v300
        %v315 = vpack.c.bf16 %v311, %v308
        %v318 = vunpack.c.l.b16 %v314
        %v319 = vunpack.c.h.b16 %v314
        %v320 = vunpack.c.l.b16 %v315
        %v321 = vunpack.c.h.b16 %v315
        %v322 = vpack.c.b16 %v318, %v318
        %v323 = vpack.c.b16 %v319, %v319
        %v324 = vpack.c.b16 %v320, %v320
        %v325 = vpack.c.b16 %v321, %v321
        %330 = vst [vmem:[%s214] sm:$0xf] %v322
        %331 = vst [vmem:[%s214 + $0x4] sm:$0xf] %v323
        %332 = vst [vmem:[%s214 + $0x8] sm:$0xf] %v324
        %333 = vst [vmem:[%s214 + $0xc] sm:$0xf] %v325
        %v334 = vlaneseq
        %v335 = vand.u32 %v334, 127
        %s336 = smul.u32 %s15, 128
        %v337 = vstv %s336
        %v338 = vadd.s32 %v337, %v335
        %vm339 = vcmp.lt.s32.totalorder %v338, 300
        %v340 = vsel %vm339, 1, 0
        %vm341 = vcmp.eq.s32.totalorder %v340, 1
        %v342 = vsel %vm341, %v300, 0.0
        %v343 = vsel %vm341, %v303, 0.0
        %v344 = vsel %vm341, %v308, 0.0
        %v345 = vsel %vm341, %v311, 0.0
        %346 = vadd.xlane.f32.xlu0 %v342
        %v347 = vpop.xlane.xlu0 %346
        %348 = vadd.xlane.f32.xlu0 %v343
        %v349 = vpop.xlane.xlu0 %348
        %350 = vadd.xlane.f32.xlu0 %v344
        %v351 = vpop.xlane.xlu0 %350
        %352 = vadd.xlane.f32.xlu0 %v345
        %v353 = vpop.xlane.xlu0 %352
        %v354 = vmul.f32 %v342, %v342
        %v355 = vmul.f32 %v343, %v343
        %v356 = vmul.f32 %v344, %v344
        %v357 = vmul.f32 %v345, %v345
        %358 = vadd.xlane.f32.xlu0 %v354
        %v359 = vpop.xlane.xlu0 %358
        %360 = vadd.xlane.f32.xlu0 %v355
        %v361 = vpop.xlane.xlu0 %360
        %362 = vadd.xlane.f32.xlu0 %v356
        %v363 = vpop.xlane.xlu0 %362
        %364 = vadd.xlane.f32.xlu0 %v357
        %v365 = vpop.xlane.xlu0 %364
        %vm366 = vcmask 7168
        %v367 = vsel %vm366, %v347, %v359
        %v368 = vsel %vm366, %v349, %v361
        %v369 = vsel %vm366, %v351, %v363
        %v370 = vsel %vm366, %v353, %v365
        %vm371 = vcmask 15360
        %372 = vst.msk [vmem:[%s226] sm:$0xff] %vm371, %v367
        %373 = vst.msk [vmem:[%s226 + $0x8] sm:$0xff] %vm371, %v368
        %374 = vst.msk [vmem:[%s226 + $0x10] sm:$0xff] %vm371, %v369
        %375 = vst.msk [vmem:[%s226 + $0x18] sm:$0xff] %vm371, %v370
        %s376 = sand.u32 %s70, 1
        %s377 = sand.u32 %s70, 1
        %s378 = smul.addr %s377, 16
        %s379 = scalar_lea.vmem [#allocation3], %s378
        %p380 = scmp.lt.s32.totalorder %s15, 2
        %s381 = scalar_select %p380, %s15, 2
        %s382 = smul.addr %s381, 4
        %s383 = smul.addr %s382, 8
        %s384 = scalar_lea.vmem %s3, %s383
        // Predicated region
        $region70: #{_lambda_.4} parent=64 // pred_check
          %p385 = pneg %p80
        $region71: #{_lambda_.4} parent=64 // pred_check_branch
          %387 = sbr.rel (%p385) target = $region73
        $region72: #{_lambda_.4} parent=64 // pred_region
          %s388 = smul.addr %s15, 4
          %s389 = scalar_lea.vmem %s2, %s388
          // Predicated region
          $region74: #{_lambda_.4} parent=72 // pred_check
            _
          $region75: #{_lambda_.4} parent=72 // pred_check_branch
            %391 = sbr.rel (0) target = $region77
          $region76: #{_lambda_.4} parent=72 // pred_region
            // Predicated region
            $region78: #{_lambda_.4} parent=76 // pred_check
              _
            $region79: #{_lambda_.4} parent=76 // pred_check_branch
              %393 = sbr.rel target = $region81
            $region80: #{_lambda_.4} parent=76 // pred_region
              // Predicated region
              $region93: #{_lambda_.4} parent=80 // pred_check
                _
              $region94: #{_lambda_.4} parent=80 // pred_check_branch
                %414 = sbr.rel (0) target = $region96
              $region95: #{_lambda_.4} parent=80 // pred_region
                loop: start=0, step=1, limit=1
                $region97: #{_lambda_.4} parent=95 // loop_pre_header
                  _
                $region98: #{_lambda_.4} parent=95 // loop_header
                  %s416 = sphi 0, %s420
                  %p417 = scmp.ge.s32.totalorder %s416, 1
                  %s421 = sphi %s379, %s379
                  %s422 = sphi %s389, %s389
                $region99: #{_lambda_.4} parent=95 // loop_header_branch
                  %419 = sbr.rel (%p417) target = $region103
                $region100: #{_lambda_.4} parent=95 // loop_body
                  _
                $region101: #{_lambda_.4} parent=95 // loop_footer
                  %s420 = sadd.s32 1, %s416
                $region102: #{_lambda_.4} parent=95 // loop_footer_branch
                  %415 = sbr.rel target = $region98
                $region103: #{_lambda_.4} parent=95 // loop_exit
                  _
                loop: start=0, step=1, limit=1
                $region104: #{_lambda_.4} parent=95 // loop_pre_header
                  _
                $region105: #{_lambda_.4} parent=95 // loop_header
                  %s425 = sphi 0, %s429
                  %p426 = scmp.ge.s32.totalorder %s425, 1
                  %s430 = sphi %s379, %s379
                  %s431 = sphi %s389, %s389
                $region106: #{_lambda_.4} parent=95 // loop_header_branch
                  %428 = sbr.rel (%p426) target = $region110
                $region107: #{_lambda_.4} parent=95 // loop_body
                  %v432 = vld [vmem:[%s430] sm:$0xf]
                  %433 = vst [vmem:[%s431] sm:$0xf] %v432
                  %v434 = vld [vmem:[%s430 + $0x4] sm:$0xf]
                  %435 = vst [vmem:[%s431 + $0xc] sm:$0xf] %v434
                  %v436 = vld [vmem:[%s430 + $0x8] sm:$0xf]
                  %437 = vst [vmem:[%s431 + $0x18] sm:$0xf] %v436
                  %v438 = vld [vmem:[%s430 + $0xc] sm:$0xf]
                  %439 = vst [vmem:[%s431 + $0x24] sm:$0xf] %v438
                $region108: #{_lambda_.4} parent=95 // loop_footer
                  %s429 = sadd.s32 1, %s425
                $region109: #{_lambda_.4} parent=95 // loop_footer_branch
                  %424 = sbr.rel target = $region105
                $region110: #{_lambda_.4} parent=95 // loop_exit
                  _
              $region96: #{_lambda_.4} parent=80 // pred_fallthru
                _
            $region81: #{_lambda_.4} parent=76 // pred_fallthru
              _
            // Predicated region
            $region82: #{_lambda_.4} parent=76 // pred_check
              _
            $region83: #{_lambda_.4} parent=76 // pred_check_branch
              %395 = sbr.rel (0) target = $region85
            $region84: #{_lambda_.4} parent=76 // pred_region
              loop: start=0, step=1, limit=1
              $region86: #{_lambda_.4} parent=84 // loop_pre_header
                _
              $region87: #{_lambda_.4} parent=84 // loop_header
                %s398 = sphi 0, %s402
                %p399 = scmp.ge.s32.totalorder %s398, 1
                %s403 = sphi %s379, %s379
                %s404 = sphi %s389, %s389
              $region88: #{_lambda_.4} parent=84 // loop_header_branch
                %401 = sbr.rel (%p399) target = $region92
              $region89: #{_lambda_.4} parent=84 // loop_body
                %v405 = vld [vmem:[%s403] sm:$0xf]
                %406 = vst [vmem:[%s404] sm:$0xf] %v405
                %v407 = vld [vmem:[%s403 + $0x4] sm:$0xf]
                %408 = vst [vmem:[%s404 + $0xc] sm:$0xf] %v407
                %v409 = vld [vmem:[%s403 + $0x8] sm:$0xf]
                %410 = vst [vmem:[%s404 + $0x18] sm:$0xf] %v409
                %v411 = vld [vmem:[%s403 + $0xc] sm:$0xf]
                %412 = vst [vmem:[%s404 + $0x24] sm:$0xf] %v411
              $region90: #{_lambda_.4} parent=84 // loop_footer
                %s402 = sadd.s32 1, %s398
              $region91: #{_lambda_.4} parent=84 // loop_footer_branch
                %397 = sbr.rel target = $region87
              $region92: #{_lambda_.4} parent=84 // loop_exit
                _
            $region85: #{_lambda_.4} parent=76 // pred_fallthru
              _
          $region77: #{_lambda_.4} parent=72 // pred_fallthru
            _
          %440 = vnop
        $region73: #{_lambda_.4} parent=64 // pred_fallthru
          _
        // Predicated region
        $region111: #{_lambda_.4} parent=64 // pred_check
          %p441 = pneg %p106
        $region112: #{_lambda_.4} parent=64 // pred_check_branch
          %443 = sbr.rel (%p441) target = $region114
        $region113: #{_lambda_.4} parent=64 // pred_region
          _
        $region114: #{_lambda_.4} parent=64 // pred_fallthru
          _
      $region65: #{_lambda_.4} parent=5 // pred_fallthru
        _
      %p444 = scmp.le.s32.totalorder 2, %s10
      // Predicated region
      $region115: #{_lambda_.4} parent=5 // pred_check
        %p445 = pneg %p444
      $region116: #{_lambda_.4} parent=5 // pred_check_branch
        %447 = sbr.rel (%p445) target = $region118
      $region117: #{_lambda_.4} parent=5 // pred_region
        %s448 = ssub.s32 %s10, 2
        // Predicated region
        $region119: #{_lambda_.4} parent=117 // pred_check
          %p449 = pneg %p86
        $region120: #{_lambda_.4} parent=117 // pred_check_branch
          %451 = sbr.rel (%p449) target = $region122
        $region121: #{_lambda_.4} parent=117 // pred_region
          %s452 = sand.u32 %s71, 1
          %s453 = sand.u32 %s71, 1
          %s454 = smul.addr %s453, 16
          %s455 = scalar_lea.vmem [#allocation3], %s454
        $region122: #{_lambda_.4} parent=117 // pred_fallthru
          _
        // Predicated region
        $region123: #{_lambda_.4} parent=117 // pred_check
          %p456 = pneg %p112
        $region124: #{_lambda_.4} parent=117 // pred_check_branch
          %458 = sbr.rel (%p456) target = $region126
        $region125: #{_lambda_.4} parent=117 // pred_region
          %p459 = scmp.lt.s32.totalorder %s16, 2
          %s460 = scalar_select %p459, %s16, 2
          %s461 = smul.addr %s460, 4
          %s462 = smul.addr %s461, 8
          %s463 = scalar_lea.vmem %s3, %s462
        $region126: #{_lambda_.4} parent=117 // pred_fallthru
          _
      $region118: #{_lambda_.4} parent=5 // pred_fallthru
        _
    $region6: #{_lambda_.4} parent=1 // loop_footer
      %s14 = sadd.s32 1, %s10
    $region7: #{_lambda_.4} parent=1 // loop_footer_branch
      %9 = sbr.rel target = $region3
    $region8: #{_lambda_.4} parent=1 // loop_exit
      _

// kernel: _lambda_.7
$region0: #{_lambda_.7}
  #allocation0 [shape = 'u32[]', space=smem, size = 0x4, offset = 0x4, fixed_abs, tag = 'smem constant byte address 0x4 - core index']
  #allocation1 [shape = 'u32[144,128]{1,0:T(1,128)}', space=vmem, size = 0x12000, scoped, tag = 'internal scratch']
  %s0 = inlined_call_operand.vmem [shape: bf16[32,384], index: 0, kind: input, shape index: {}]
  %s1 = inlined_call_operand.vmem [shape: f32[32,2], index: 1, kind: input, shape index: {}]
  %s2 = inlined_call_operand.vmem [shape: f32[32,2], index: 2, kind: input, shape index: {}]
  %s3 = inlined_call_operand.vmem [shape: f32[1,384], index: 3, kind: output, shape index: {}]
  %s4 = sld [smem:[#allocation0]]
  $region86: #{_lambda_.7} parent=0
    _
  %s6 = ssub.s32 1, %s4
  %s7 = scalar_select 0, %s6, %s4
  $region1: #{_lambda_.7} parent=0
    #allocation2 [shape = 'u8[16384]{0}', space=vmem, size = 0x4000, scoped, tag = 'input window, operand 0']
    loop: start=0, step=1, limit=5
    $region2: #{_lambda_.7} parent=1 // loop_pre_header
      _
    $region3: #{_lambda_.7} parent=1 // loop_header
      %s9 = sphi 0, %s13
      %p10 = scmp.ge.s32.totalorder %s9, 5
      %s19 = sphi 0, %s21
      %s22 = sphi 0, %s19
      %s23 = sphi 0, %s22
      %s39 = sphi 0, %s23
      %s43 = sphi 0, %s43
      %s45 = sphi 0, %s43
      %s46 = sphi 0, %s45
      %s60 = sphi 0, %s46
      %s64 = sphi 0, %s64
      %s66 = sphi 0, %s64
      %s67 = sphi 0, %s66
      %s81 = sphi 0, %s67
      %s87 = sphi 0, %s89
      %s90 = sphi 0, %s87
      %s91 = sphi 0, %s90
      %s107 = sphi 0, %s91
    $region4: #{_lambda_.7} parent=1 // loop_header_branch
      %12 = sbr.rel (%p10) target = $region8
    $region5: #{_lambda_.7} parent=1 // loop_body
      %s14 = ssub.s32 %s9, 1
      %s15 = ssub.s32 %s9, 2
      %s16 = sadd.s32 %s9, 1
      %s17 = ssub.s32 %s9, %s16
      %p18 = scmp.eq.s32.totalorder %s17, 0
      %s20 = sadd.s32 %s19, 1
      %s21 = scalar_select %p18, %s19, %s20
      %p24 = pneg %p18
      %p25 = scmp.eq.s32.totalorder %s9, 2
      %p26 = por %p24, %p25
      %p27 = scmp.ne.s32.totalorder %s19, %s22
      %p28 = scmp.eq.s32.totalorder %s9, 0
      %p29 = por %p27, %p28
      %p30 = scmp.ne.s32.totalorder %s19, %s22
      %p31 = scmp.eq.s32.totalorder %s14, 2
      %p32 = por %p30, %p31
      %p33 = scmp.ne.s32.totalorder %s22, %s23
      %p34 = scmp.eq.s32.totalorder %s14, 0
      %p35 = por %p33, %p34
      %p36 = scmp.ne.s32.totalorder %s22, %s23
      %p37 = scmp.eq.s32.totalorder %s15, 2
      %p38 = por %p36, %p37
      %p40 = scmp.ne.s32.totalorder %s23, %s39
      %p41 = scmp.eq.s32.totalorder %s15, 0
      %p42 = por %p40, %p41
      %s44 = sadd.s32 %s43, 1
      %p47 = scmp.eq.s32.totalorder %s9, 2
      %p48 = scmp.ne.s32.totalorder %s43, %s45
      %p49 = scmp.eq.s32.totalorder %s9, 0
      %p50 = por %p48, %p49
      %p51 = scmp.ne.s32.totalorder %s43, %s45
      %p52 = scmp.eq.s32.totalorder %s14, 2
      %p53 = por %p51, %p52
      %p54 = scmp.ne.s32.totalorder %s45, %s46
      %p55 = scmp.eq.s32.totalorder %s14, 0
      %p56 = por %p54, %p55
      %p57 = scmp.ne.s32.totalorder %s45, %s46
      %p58 = scmp.eq.s32.totalorder %s15, 2
      %p59 = por %p57, %p58
      %p61 = scmp.ne.s32.totalorder %s46, %s60
      %p62 = scmp.eq.s32.totalorder %s15, 0
      %p63 = por %p61, %p62
      %s65 = sadd.s32 %s64, 1
      %p68 = scmp.eq.s32.totalorder %s9, 2
      %p69 = scmp.ne.s32.totalorder %s64, %s66
      %p70 = scmp.eq.s32.totalorder %s9, 0
      %p71 = por %p69, %p70
      %p72 = scmp.ne.s32.totalorder %s64, %s66
      %p73 = scmp.eq.s32.totalorder %s14, 2
      %p74 = por %p72, %p73
      %p75 = scmp.ne.s32.totalorder %s66, %s67
      %p76 = scmp.eq.s32.totalorder %s14, 0
      %p77 = por %p75, %p76
      %p78 = scmp.ne.s32.totalorder %s66, %s67
      %p79 = scmp.eq.s32.totalorder %s15, 2
      %p80 = por %p78, %p79
      %p82 = scmp.ne.s32.totalorder %s67, %s81
      %p83 = scmp.eq.s32.totalorder %s15, 0
      %p84 = por %p82, %p83
      %s85 = ssub.s32 %s9, %s16
      %p86 = scmp.eq.s32.totalorder %s85, 0
      %s88 = sadd.s32 %s87, 1
      %s89 = scalar_select %p86, %s87, %s88
      %p92 = pneg %p86
      %p93 = scmp.eq.s32.totalorder %s9, 2
      %p94 = por %p92, %p93
      %p95 = scmp.ne.s32.totalorder %s87, %s90
      %p96 = scmp.eq.s32.totalorder %s9, 0
      %p97 = por %p95, %p96
      %p98 = scmp.ne.s32.totalorder %s87, %s90
      %p99 = scmp.eq.s32.totalorder %s14, 2
      %p100 = por %p98, %p99
      %p101 = scmp.ne.s32.totalorder %s90, %s91
      %p102 = scmp.eq.s32.totalorder %s14, 0
      %p103 = por %p101, %p102
      %p104 = scmp.ne.s32.totalorder %s90, %s91
      %p105 = scmp.eq.s32.totalorder %s15, 2
      %p106 = por %p104, %p105
      %p108 = scmp.ne.s32.totalorder %s91, %s107
      %p109 = scmp.eq.s32.totalorder %s15, 0
      %p110 = por %p108, %p109
      %p111 = scmp.le.s32.totalorder 1, %s9
      %p112 = scmp.lt.s32.totalorder %s9, 4
      %p113 = pnand %p111, %p112
      %p114 = pneg %p113
      // Predicated region
      $region9: #{_lambda_.7} parent=5 // pred_check
        _
      $region10: #{_lambda_.7} parent=5 // pred_check_branch
        %116 = sbr.rel (%p113) target = $region12
      $region11: #{_lambda_.7} parent=5 // pred_region
        %s117 = ssub.s32 %s9, 1
        // Predicated region
        $region13: #{_lambda_.7} parent=11 // pred_check
          %p118 = pneg %p56
        $region14: #{_lambda_.7} parent=11 // pred_check_branch
          %120 = sbr.rel (%p118) target = $region16
        $region15: #{_lambda_.7} parent=11 // pred_region
          _
        $region16: #{_lambda_.7} parent=11 // pred_fallthru
          _
        // Predicated region
        $region17: #{_lambda_.7} parent=11 // pred_check
          %p121 = pneg %p77
        $region18: #{_lambda_.7} parent=11 // pred_check_branch
          %123 = sbr.rel (%p121) target = $region20
        $region19: #{_lambda_.7} parent=11 // pred_region
          _
        $region20: #{_lambda_.7} parent=11 // pred_fallthru
          _
      $region12: #{_lambda_.7} parent=5 // pred_fallthru
        _
      %p124 = scmp.lt.s32.totalorder %s9, 3
      // Predicated region
      $region21: #{_lambda_.7} parent=5 // pred_check
        %p125 = pneg %p124
      $region22: #{_lambda_.7} parent=5 // pred_check_branch
        %127 = sbr.rel (%p125) target = $region24
      $region23: #{_lambda_.7} parent=5 // pred_region
        // Predicated region
        $region25: #{_lambda_.7} parent=23 // pred_check
          %p128 = pneg %p29
        $region26: #{_lambda_.7} parent=23 // pred_check_branch
          %130 = sbr.rel (%p128) target = $region28
        $region27: #{_lambda_.7} parent=23 // pred_region
          %s131 = sand.u32 %s19, 1
          %s132 = sand.u32 %s19, 1
          %s133 = smul.addr %s132, 16
          %s134 = scalar_lea.vmem [#allocation2], %s133
          %s135 = smul.addr %s9, 4
          %s136 = scalar_lea.vmem %s0, %s135
          // Predicated region
          $region29: #{_lambda_.7} parent=27 // pred_check
            _
          $region30: #{_lambda_.7} parent=27 // pred_check_branch
            %138 = sbr.rel (0) target = $region32
          $region31: #{_lambda_.7} parent=27 // pred_region
            // Predicated region
            $region33: #{_lambda_.7} parent=31 // pred_check
              _
            $region34: #{_lambda_.7} parent=31 // pred_check_branch
              %140 = sbr.rel target = $region36
            $region35: #{_lambda_.7} parent=31 // pred_region
              // Predicated region
              $region48: #{_lambda_.7} parent=35 // pred_check
                _
              $region49: #{_lambda_.7} parent=35 // pred_check_branch
                %161 = sbr.rel (0) target = $region51
              $region50: #{_lambda_.7} parent=35 // pred_region
                loop: start=0, step=1, limit=1
                $region52: #{_lambda_.7} parent=50 // loop_pre_header
                  _
                $region53: #{_lambda_.7} parent=50 // loop_header
                  %s163 = sphi 0, %s167
                  %p164 = scmp.ge.s32.totalorder %s163, 1
                  %s168 = sphi %s136, %s136
                  %s169 = sphi %s134, %s134
                $region54: #{_lambda_.7} parent=50 // loop_header_branch
                  %166 = sbr.rel (%p164) target = $region58
                $region55: #{_lambda_.7} parent=50 // loop_body
                  _
                $region56: #{_lambda_.7} parent=50 // loop_footer
                  %s167 = sadd.s32 1, %s163
                $region57: #{_lambda_.7} parent=50 // loop_footer_branch
                  %162 = sbr.rel target = $region53
                $region58: #{_lambda_.7} parent=50 // loop_exit
                  _
                loop: start=0, step=1, limit=1
                $region59: #{_lambda_.7} parent=50 // loop_pre_header
                  _
                $region60: #{_lambda_.7} parent=50 // loop_header
                  %s172 = sphi 0, %s176
                  %p173 = scmp.ge.s32.totalorder %s172, 1
                  %s177 = sphi %s136, %s136
                  %s178 = sphi %s134, %s134
                $region61: #{_lambda_.7} parent=50 // loop_header_branch
                  %175 = sbr.rel (%p173) target = $region65
                $region62: #{_lambda_.7} parent=50 // loop_body
                  %v179 = vld [vmem:[%s177] sm:$0xf]
                  %180 = vst [vmem:[%s178] sm:$0xf] %v179
                  %v181 = vld [vmem:[%s177 + $0xc] sm:$0xf]
                  %182 = vst [vmem:[%s178 + $0x4] sm:$0xf] %v181
                  %v183 = vld [vmem:[%s177 + $0x18] sm:$0xf]
                  %184 = vst [vmem:[%s178 + $0x8] sm:$0xf] %v183
                  %v185 = vld [vmem:[%s177 + $0x24] sm:$0xf]
                  %186 = vst [vmem:[%s178 + $0xc] sm:$0xf] %v185
                $region63: #{_lambda_.7} parent=50 // loop_footer
                  %s176 = sadd.s32 1, %s172
                $region64: #{_lambda_.7} parent=50 // loop_footer_branch
                  %171 = sbr.rel target = $region60
                $region65: #{_lambda_.7} parent=50 // loop_exit
                  _
              $region51: #{_lambda_.7} parent=35 // pred_fallthru
                _
            $region36: #{_lambda_.7} parent=31 // pred_fallthru
              _
            // Predicated region
            $region37: #{_lambda_.7} parent=31 // pred_check
              _
            $region38: #{_lambda_.7} parent=31 // pred_check_branch
              %142 = sbr.rel (0) target = $region40
            $region39: #{_lambda_.7} parent=31 // pred_region
              loop: start=0, step=1, limit=1
              $region41: #{_lambda_.7} parent=39 // loop_pre_header
                _
              $region42: #{_lambda_.7} parent=39 // loop_header
                %s145 = sphi 0, %s149
                %p146 = scmp.ge.s32.totalorder %s145, 1
                %s150 = sphi %s136, %s136
                %s151 = sphi %s134, %s134
              $region43: #{_lambda_.7} parent=39 // loop_header_branch
                %148 = sbr.rel (%p146) target = $region47
              $region44: #{_lambda_.7} parent=39 // loop_body
                %v152 = vld [vmem:[%s150] sm:$0xf]
                %153 = vst [vmem:[%s151] sm:$0xf] %v152
                %v154 = vld [vmem:[%s150 + $0xc] sm:$0xf]
                %155 = vst [vmem:[%s151 + $0x4] sm:$0xf] %v154
                %v156 = vld [vmem:[%s150 + $0x18] sm:$0xf]
                %157 = vst [vmem:[%s151 + $0x8] sm:$0xf] %v156
                %v158 = vld [vmem:[%s150 + $0x24] sm:$0xf]
                %159 = vst [vmem:[%s151 + $0xc] sm:$0xf] %v158
              $region45: #{_lambda_.7} parent=39 // loop_footer
                %s149 = sadd.s32 1, %s145
              $region46: #{_lambda_.7} parent=39 // loop_footer_branch
                %144 = sbr.rel target = $region42
              $region47: #{_lambda_.7} parent=39 // loop_exit
                _
            $region40: #{_lambda_.7} parent=31 // pred_fallthru
              _
          $region32: #{_lambda_.7} parent=27 // pred_fallthru
            _
          %187 = vnop
        $region28: #{_lambda_.7} parent=23 // pred_fallthru
          _
      $region24: #{_lambda_.7} parent=5 // pred_fallthru
        _
      %p188 = scmp.le.s32.totalorder 1, %s9
      %p189 = scmp.lt.s32.totalorder %s9, 4
      %p190 = pnand %p188, %p189
      %p191 = pneg %p190
      // Predicated region
      $region66: #{_lambda_.7} parent=5 // pred_check
        _
      $region67: #{_lambda_.7} parent=5 // pred_check_branch
        %193 = sbr.rel (%p190) target = $region69
      $region68: #{_lambda_.7} parent=5 // pred_region
        %s194 = ssub.s32 %s9, 1
        %s195 = sand.u32 %s22, 1
        %s196 = sand.u32 %s22, 1
        %s197 = smul.addr %s196, 16
        %s198 = scalar_lea.vmem [#allocation2], %s197
        // Predicated region
        $region70: #{_lambda_.7} parent=68 // pred_check
          %p199 = pneg %p35
        $region71: #{_lambda_.7} parent=68 // pred_check_branch
          %201 = sbr.rel (%p199) target = $region73
        $region72: #{_lambda_.7} parent=68 // pred_region
          _
        $region73: #{_lambda_.7} parent=68 // pred_fallthru
          _
        %s202 = sand.u32 %s22, 1
        %s203 = sand.u32 %s22, 1
        %s204 = smul.addr %s203, 16
        %s205 = scalar_lea.vmem [#allocation2], %s204
        %p206 = pneg %p35
        %p207 = pneg %p32
        %p208 = pneg %p56
        %p209 = pneg %p53
        %p210 = pneg %p77
        %p211 = pneg %p74
        %p212 = pneg %p103
        %p213 = pneg %p100
        %p214 = scmp.lt.s32.totalorder %s14, 2
        %s215 = scalar_select %p214, %s14, 2
        %s216 = scalar_lea.vmem %s3, %s215
        %p217 = scmp.lt.s32.totalorder %s14, 2
        %s218 = scalar_select %p217, %s14, 2
        %s219 = scalar_lea.vmem %s3, %s218
        %v220 = vld [vmem:[%s198] sm:$0xf]
        %v221 = vld [vmem:[%s198 + $0x4] sm:$0xf]
        %v222 = vld [vmem:[%s198 + $0x8] sm:$0xf]
        %v223 = vld [vmem:[%s198 + $0xc] sm:$0xf]
        %v224 = vunpack.c.l.bf16 %v220
        %v225 = vunpack.c.l.bf16 %v221
        %v226 = vunpack.c.l.bf16 %v222
        %v227 = vunpack.c.l.bf16 %v223
        %v228 = vld [vmem:[%s1] sm:$0xff]
        %v229 = vld [vmem:[%s1 + $0x8] sm:$0xff]
        %v230 = vld [vmem:[%s1 + $0x10] sm:$0xff]
        %v231 = vld [vmem:[%s1 + $0x18] sm:$0xff]
        %233 = vset.pattern.permute.xlu0 0
        %234 = vperm.xlu0 %233, %v228
        %v235 = vpop.permute.xlu0 %234
        %238 = vset.pattern.permute.xlu0 0
        %239 = vperm.xlu0 %238, %v229
        %v240 = vpop.permute.xlu0 %239
        %243 = vset.pattern.permute.xlu0 0
        %244 = vperm.xlu0 %243, %v230
        %v245 = vpop.permute.xlu0 %244
        %248 = vset.pattern.permute.xlu0 0
        %249 = vperm.xlu0 %248, %v231
        %v250 = vpop.permute.xlu0 %249
        %v252 = vmul.f32 %v224, %v235
        %v253 = vmul.f32 %v225, %v240
        %v254 = vmul.f32 %v226, %v245
        %v255 = vmul.f32 %v227, %v250
        %256 = vset.pattern.permute.xlu0 1
        %257 = vperm.xlu0 %256, %v228
        %v258 = vpop.permute.xlu0 %257
        %260 = vset.pattern.permute.xlu0 1
        %261 = vperm.xlu0 %260, %v229
        %v262 = vpop.permute.xlu0 %261
        %264 = vset.pattern.permute.xlu0 1
        %265 = vperm.xlu0 %264, %v230
        %v266 = vpop.permute.xlu0 %265
        %268 = vset.pattern.permute.xlu0 1
        %269 = vperm.xlu0 %268, %v231
        %v270 = vpop.permute.xlu0 %269
        %v272 = vadd.f32 %v252, %v258
        %v273 = vadd.f32 %v253, %v262
        %v274 = vadd.f32 %v254, %v266
        %v275 = vadd.f32 %v255, %v270
        %v276 = vmax.f32 %v272, 0.0
        %v277 = vmax.f32 %v273, 0.0
        %v278 = vmax.f32 %v274, 0.0
        %v279 = vmax.f32 %v275, 0.0
        %v280 = vld [vmem:[%s2] sm:$0xff]
        %v281 = vld [vmem:[%s2 + $0x8] sm:$0xff]
        %v282 = vld [vmem:[%s2 + $0x10] sm:$0xff]
        %v283 = vld [vmem:[%s2 + $0x18] sm:$0xff]
        %285 = vset.pattern.permute.xlu0 0
        %286 = vperm.xlu0 %285, %v280
        %v287 = vpop.permute.xlu0 %286
        %290 = vset.pattern.permute.xlu0 0
        %291 = vperm.xlu0 %290, %v281
        %v292 = vpop.permute.xlu0 %291
        %295 = vset.pattern.permute.xlu0 0
        %296 = vperm.xlu0 %295, %v282
        %v297 = vpop.permute.xlu0 %296
        %300 = vset.pattern.permute.xlu0 0
        %301 = vperm.xlu0 %300, %v283
        %v302 = vpop.permute.xlu0 %301
        %v304 = vmul.f32 %v276, %v287
        %v305 = vmul.f32 %v277, %v292
        %v306 = vmul.f32 %v278, %v297
        %v307 = vmul.f32 %v279, %v302
        %v308 = vadd.f32 %v304, %v305
        %v309 = vadd.f32 %v308, %v306
        %v310 = vadd.f32 %v309, %v307
        %v311 = vrot.slane %v310, 4
        %v312 = vadd.f32 %v310, %v311
        %v313 = vrot.slane %v312, 2
        %v314 = vadd.f32 %v312, %v313
        %v315 = vrot.slane %v314, 1
        %v316 = vadd.f32 %v314, %v315
        %v317 = vld [vmem:[%s2] sm:$0x1]
        %319 = vset.pattern.permute.xlu0 1
        %320 = vperm.xlu0 %319, %v317
        %v321 = vpop.permute.xlu0 %320
        %v323 = vadd.f32 %v316, %v321
        %v324 = vxor.u32 %v323, 2147483648
        %v325 = vmul.f32 %v324, 1.442695
        %v326 = vpow.pop %v325
        %v327 = vadd.f32 %v326, 1.0
        %v328 = vrcp.pop %v327
        %v329 = vmul.f32 1.0, %v328
        %330 = vst [vmem:[%s219] sm:$0x1] %v329
        %p331 = scmp.lt.s32.totalorder %s14, 2
        %s332 = scalar_select %p331, %s14, 2
        %s333 = scalar_lea.vmem %s3, %s332
        // Predicated region
        $region74: #{_lambda_.7} parent=68 // pred_check
          %p334 = pneg %p100
        $region75: #{_lambda_.7} parent=68 // pred_check_branch
          %336 = sbr.rel (%p334) target = $region77
        $region76: #{_lambda_.7} parent=68 // pred_region
          _
        $region77: #{_lambda_.7} parent=68 // pred_fallthru
          _
      $region69: #{_lambda_.7} parent=5 // pred_fallthru
        _
      %p337 = scmp.le.s32.totalorder 2, %s9
      // Predicated region
      $region78: #{_lambda_.7} parent=5 // pred_check
        %p338 = pneg %p337
      $region79: #{_lambda_.7} parent=5 // pred_check_branch
        %340 = sbr.rel (%p338) target = $region81
      $region80: #{_lambda_.7} parent=5 // pred_region
        %s341 = ssub.s32 %s9, 2
        // Predicated region
        $region82: #{_lambda_.7} parent=80 // pred_check
          %p342 = pneg %p106
        $region83: #{_lambda_.7} parent=80 // pred_check_branch
          %344 = sbr.rel (%p342) target = $region85
        $region84: #{_lambda_.7} parent=80 // pred_region
          %p345 = scmp.lt.s32.totalorder %s15, 2
          %s346 = scalar_select %p345, %s15, 2
          %s347 = scalar_lea.vmem %s3, %s346
        $region85: #{_lambda_.7} parent=80 // pred_fallthru
          _
      $region81: #{_lambda_.7} parent=5 // pred_fallthru
        _
    $region6: #{_lambda_.7} parent=1 // loop_footer
      %s13 = sadd.s32 1, %s9
    $region7: #{_lambda_.7} parent=1 // loop_footer_branch
      %8 = sbr.rel target = $region3
    $region8: #{_lambda_.7} parent=1 // loop_exit
      _

</llo_original>
